<compile_context>
chip_gen: v5e
topology: v5e:2x2
jax: 0.10.0
libtpu: 0.0.40
codegen_flags: <defaults>
</compile_context>

<pallas_src>
import functools

import jax
import jax.numpy as jnp
from jax.experimental import pallas as pl
from jax.experimental.pallas import tpu as pltpu


# ----------------------------------------------------------------------------
# Pallas kernel: multi-source 3x3 "same" conv as one im2col GEMM + bias
#                + optional LeakyReLU(0.01) + fused scaled-residual epilogue
# ----------------------------------------------------------------------------
def _conv3x3_kernel(*refs, n_src, n_res, th, ow, leaky, out_scale, res_scales):
    # refs layout:
    #   bodies[s]: (1, th, ow, cin_s)       bf16   body rows of source s
    #   tops[s]  : (1, 1,  ow, cin_s)       bf16   row above the tile (clamped)
    #   bots[s]  : (1, 1,  ow, cin_s)       bf16   row below the tile (clamped)
    #   w_ref    : (9*Cin_total, Cout)      bf16   flattened (ky,kx,cin) weight
    #   b_ref    : (1, Cout)                f32
    #   res[j]   : (1, 1, th*ow, Cout)      bf16   fused residual inputs
    #   o_ref    : (1, 1, th*ow, Cout)      bf16
    bodies = refs[:n_src]
    tops = refs[n_src:2 * n_src]
    bots = refs[2 * n_src:3 * n_src]
    w_ref = refs[3 * n_src]
    b_ref = refs[3 * n_src + 1]
    res_refs = refs[3 * n_src + 2:3 * n_src + 2 + n_res]
    o_ref = refs[3 * n_src + 2 + n_res]

    t = pl.program_id(1)
    # Halo rows come from clamped index maps; at the image edges replace them
    # with the zero padding of the "same" conv.
    keep_top = jnp.where(t == 0, 0.0, 1.0).astype(jnp.bfloat16)
    keep_bot = jnp.where(t == pl.num_programs(1) - 1, 0.0, 1.0).astype(jnp.bfloat16)

    tiles = []
    for s in range(n_src):
        c = bodies[s].shape[-1]
        body = bodies[s][0]                       # (th, ow, c) bf16
        top = tops[s][0, 0] * keep_top            # (ow, c)
        bot = bots[s][0, 0] * keep_bot            # (ow, c)
        tile = jnp.concatenate([top[None], body, bot[None]], axis=0)  # (th+2, ow, c)
        zcol = jnp.zeros((th + 2, 1, c), jnp.bfloat16)
        tiles.append(jnp.concatenate([zcol, tile, zcol], axis=1))     # (th+2, ow+2, c)

    # im2col patches (th*ow, 9*Cin_total), column order (ky, kx, source, channel)
    # -- matches w.reshape(9*Cin_total, Cout) of the concatenated-input weight.
    cols = []
    for dy in range(3):
        for dx in range(3):
            for s in range(n_src):
                c = tiles[s].shape[-1]
                cols.append(tiles[s][dy:dy + th, dx:dx + ow, :].reshape(th * ow, c))
    patches = jnp.concatenate(cols, axis=-1)

    # One big-K GEMM on the MXU (bf16 operands, f32 accumulation).
    acc = jnp.dot(patches, w_ref[...], preferred_element_type=jnp.float32)
    acc = acc + b_ref[...]
    if leaky:
        acc = jnp.where(acc >= 0, acc, 0.01 * acc)  # nn.LeakyReLU() default slope
    if out_scale != 1.0:
        acc = acc * out_scale
    for j in range(n_res):
        r = res_refs[j][0, 0].astype(jnp.float32)
        acc = acc + (r * res_scales[j] if res_scales[j] != 1.0 else r)
    o_ref[0, 0] = acc.astype(o_ref.dtype)


def _pick_tile_rows(H, W, cin_total, cout, n_res, budget=24 * 1024 * 1024):
    """Largest row tile whose per-step VMEM estimate fits the budget."""
    cands = [t for t in (64, 32, 16, 8) if H % t == 0]
    if not cands:
        return H
    for th in cands:
        io = 2 * ((th + 2) * W * cin_total * 2            # double-buffered inputs
                  + th * W * cout * 2 * (1 + n_res))      # output + residual tiles
        tmp = 2 * th * W * (9 * cin_total * 2 + cout * 4)  # im2col + f32 acc (+slack)
        wb = 2 * 9 * cin_total * cout * 2
        if io + tmp + wb <= budget:
            return th
    return cands[-1]


def conv3x3(sources, w, b, leaky, out_scale=1.0, residuals=(), tile_rows=None):
    """out = (conv3x3_same(concat(sources), w) + b) [LeakyReLU] * out_scale
             + sum_j residuals[j][0] * residuals[j][1]     -> bf16

    sources[s]: (N, H, W, cin_s)   w: (3, 3, sum(cin_s), Cout)   b: (Cout,)
    residuals: tuple of ((N, H, W, Cout) array, python-float scale).
    """
    if not isinstance(sources, (list, tuple)):
        sources = [sources]
    n_src = len(sources)
    n_res = len(residuals)
    N, H, W, _ = sources[0].shape
    cins = [int(s.shape[-1]) for s in sources]
    cin_total = sum(cins)
    Cout = int(w.shape[-1])
    assert w.shape == (3, 3, cin_total, Cout), (w.shape, cin_total, Cout)
    assert W % 8 == 0, "width must be a multiple of 8 (sublane tiling)"
    th = tile_rows if tile_rows is not None else _pick_tile_rows(
        H, W, cin_total, Cout, n_res)
    assert H % th == 0, (H, th)
    nT = H // th

    src_bf = [s.astype(jnp.bfloat16) for s in sources]
    body_specs = [pl.BlockSpec((1, th, W, c), lambda n, t: (n, t, 0, 0))
                  for c in cins]
    top_specs = [pl.BlockSpec(
        (1, 1, W, c), lambda n, t: (n, jnp.maximum(t * th - 1, 0), 0, 0))
        for c in cins]
    bot_specs = [pl.BlockSpec(
        (1, 1, W, c), lambda n, t: (n, jnp.minimum(t * th + th, H - 1), 0, 0))
        for c in cins]

    w9 = w.astype(jnp.bfloat16).reshape(9 * cin_total, Cout)
    b2 = b.astype(jnp.float32).reshape(1, Cout)
    w_spec = pl.BlockSpec((9 * cin_total, Cout), lambda n, t: (0, 0))
    b_spec = pl.BlockSpec((1, Cout), lambda n, t: (0, 0))

    res_arrs, res_specs, res_scales = [], [], []
    for r, sc in residuals:
        assert r.shape == (N, H, W, Cout), r.shape
        res_arrs.append(r.astype(jnp.bfloat16).reshape(N, nT, th * W, Cout))
        res_specs.append(pl.BlockSpec((1, 1, th * W, Cout),
                                      lambda n, t: (n, t, 0, 0)))
        res_scales.append(float(sc))

    kern = functools.partial(
        _conv3x3_kernel, n_src=n_src, n_res=n_res, th=th, ow=W, leaky=leaky,
        out_scale=float(out_scale), res_scales=tuple(res_scales))

    out = pl.pallas_call(
        kern,
        out_shape=jax.ShapeDtypeStruct((N, nT, th * W, Cout), jnp.bfloat16),
        grid=(N, nT),
        in_specs=body_specs + top_specs + bot_specs + [w_spec, b_spec] + res_specs,
        out_specs=pl.BlockSpec((1, 1, th * W, Cout), lambda n, t: (n, t, 0, 0)),
        compiler_params=pltpu.CompilerParams(
            dimension_semantics=("parallel", "parallel"),
            vmem_limit_bytes=64 * 1024 * 1024),
    )(*src_bf, *src_bf, *src_bf, w9, b2, *res_arrs)
    return out.reshape(N, H, W, Cout)


# Pure-JAX reference with identical numerics (bf16 in / f32 acc / bf16 out).
def ref_conv3x3(sources, w, b, leaky, out_scale=1.0, residuals=(), tile_rows=None):
    if not isinstance(sources, (list, tuple)):
        sources = [sources]
    x = jnp.concatenate([s.astype(jnp.bfloat16) for s in sources], axis=-1)
    out = jax.lax.conv_general_dilated(
        x, w.astype(jnp.bfloat16), window_strides=(1, 1), padding="SAME",
        dimension_numbers=("NHWC", "HWIO", "NHWC"),
        preferred_element_type=jnp.float32)
    out = out + b.astype(jnp.float32)
    if leaky:
        out = jnp.where(out >= 0, out, 0.01 * out)
    if out_scale != 1.0:
        out = out * out_scale
    for r, sc in residuals:
        r32 = r.astype(jnp.bfloat16).astype(jnp.float32)
        out = out + (r32 * sc if sc != 1.0 else r32)
    return out.astype(jnp.bfloat16)


# ----------------------------------------------------------------------------
# Model glue (matches GeneratorRRDB forward semantics)
# ----------------------------------------------------------------------------
def pixel_shuffle(x, r=2):
    # PyTorch PixelShuffle semantics expressed in NHWC.
    N, H, W, C = x.shape
    co = C // (r * r)
    x = x.reshape(N, H, W, co, r, r)
    x = x.transpose(0, 1, 4, 2, 5, 3)
    return x.reshape(N, H * r, W * r, co)


def res_in_res_dense_block(x, drbs, conv, res_scale=0.2):
    # Dense connectivity WITHOUT materializing torch.cat: each conv takes the
    # previously produced maps as separate sources (identical math).  The
    # DenseResBlock residual -- and for the last DRB also the RRDB residual --
    # are folded into the final conv's epilogue:
    #   (conv5*0.2 + drb_in)*0.2 + x  ==  conv5*0.04 + drb_in*0.2 + x
    out = x
    n_drb = len(drbs)
    for j, drb in enumerate(drbs):
        drb_in = out
        sources = [out]
        for i in range(4):                       # 4 convs with LeakyReLU
            y = conv(sources, *drb[i], leaky=True)
            sources.append(y)
        if j < n_drb - 1:
            out = conv(sources, *drb[4], leaky=False, out_scale=res_scale,
                       residuals=((drb_in, 1.0),))
        else:
            out = conv(sources, *drb[4], leaky=False,
                       out_scale=res_scale * res_scale,
                       residuals=((drb_in, res_scale), (x, 1.0)))
    return out


def generator_forward(x_nchw, params, conv):
    x = jnp.transpose(x_nchw, (0, 2, 3, 1))      # NCHW -> NHWC
    out1 = conv([x], *params["conv1"], leaky=False)
    out = out1
    for blk in params["res_blocks"]:
        out = res_in_res_dense_block(out, blk, conv)
    # conv2 with the trunk residual (out1 + out2) folded into its epilogue.
    out = conv([out], *params["conv2"], leaky=False, residuals=((out1, 1.0),))
    for (w, b) in params["ups"]:
        out = conv([out], w, b, leaky=True)
        out = pixel_shuffle(out, 2)
    out = conv([out], *params["conv3a"], leaky=True)
    out = conv([out], *params["conv3b"], leaky=False)
    return jnp.transpose(out.astype(jnp.float32), (0, 3, 1, 2))   # NHWC -> NCHW


# ----------------------------------------------------------------------------
# Deterministic parameter init (shapes from GeneratorRRDB.__init__)
# ----------------------------------------------------------------------------
def init_params(key, channels, filters, num_block, num_upsample):
    keys = iter(jax.random.split(key, 4096))

    def conv_p(cin, cout):
        kw, kb = jax.random.split(next(keys))
        fan_in = cin * 9
        w = jax.random.normal(kw, (3, 3, cin, cout), jnp.float32) / jnp.sqrt(fan_in)
        b = 0.01 * jax.random.normal(kb, (cout,), jnp.float32)
        return (w, b)

    params = {}
    params["conv1"] = conv_p(channels, filters)
    res_blocks = []
    for _ in range(num_block):
        drbs = []
        for _ in range(3):
            drb = [conv_p(i * filters, filters) for i in range(1, 5)]
            drb.append(conv_p(5 * filters, filters))
            drbs.append(drb)
        res_blocks.append(drbs)
    params["res_blocks"] = res_blocks
    params["conv2"] = conv_p(filters, filters)
    params["ups"] = [conv_p(filters, filters * 4) for _ in range(num_upsample)]
    params["conv3a"] = conv_p(filters, filters)
    params["conv3b"] = conv_p(filters, channels)
    return params


# ----------------------------------------------------------------------------
if __name__ == "__main__":
    # Small but structure-preserving config.
    N, channels, filters, num_block, num_upsample, H, W = 2, 3, 8, 2, 1, 16, 16

    key = jax.random.PRNGKey(0)
    kx, kp, ku = jax.random.split(key, 3)
    x = jax.random.normal(kx, (N, channels, H, W), jnp.float32)  # NCHW like PyTorch
    params = init_params(kp, channels, filters, num_block, num_upsample)

    # --- unit check: multi-source conv + fused residual epilogue, forced row
    #     tiling so the halo path (nT > 1) is exercised ------------------------
    k1, k2, k3, k4, k5 = jax.random.split(ku, 5)
    s0 = jax.random.normal(k1, (N, H, W, filters), jnp.float32)
    s1 = jax.random.normal(k2, (N, H, W, filters), jnp.float32)
    wt = 0.1 * jax.random.normal(k3, (3, 3, 2 * filters, filters), jnp.float32)
    bb = 0.01 * jax.random.normal(k4, (filters,), jnp.float32)
    rr = jax.random.normal(k5, (N, H, W, filters), jnp.float32)

    def unit(fn):
        return jax.jit(lambda a0, a1, w_, b_, r_: fn(
            [a0, a1], w_, b_, leaky=True, out_scale=0.5,
            residuals=((r_, 0.3),), tile_rows=4))

    y_u = jax.block_until_ready(unit(conv3x3)(s0, s1, wt, bb, rr))
    y_r = jax.block_until_ready(unit(ref_conv3x3)(s0, s1, wt, bb, rr))
    err = float(jnp.max(jnp.abs(y_u.astype(jnp.float32) - y_r.astype(jnp.float32))))
    assert jnp.allclose(y_u.astype(jnp.float32), y_r.astype(jnp.float32),
                        atol=5e-2, rtol=5e-2), err

    # --- full forward ---------------------------------------------------------
    fwd = jax.jit(lambda x_, p_: generator_forward(x_, p_, conv3x3))
    y = jax.block_until_ready(fwd(x, params))

    ref_fwd = jax.jit(lambda x_, p_: generator_forward(x_, p_, ref_conv3x3))
    y_ref = jax.block_until_ready(ref_fwd(x, params))

    assert y.shape == (N, channels, H * 2 ** num_upsample,
                       W * 2 ** num_upsample), y.shape
    assert jnp.all(jnp.isfinite(y))
    # Both pipelines are bf16 per conv; tolerance covers accumulated rounding.
    assert jnp.allclose(y, y_ref, atol=1e-1, rtol=1e-1), (
        float(jnp.max(jnp.abs(y - y_ref))))

    print("KERNEL_OK")
</pallas_src>

<mosaic_0001>
module attributes {stable_mosaic.version = 11 : i64} {
  func.func @_conv3x3_kernel(%arg0: i32, %arg1: i32, %arg2: memref<1x4x16x8xbf16, #tpu.memory_space<vmem>>, %arg3: memref<1x4x16x8xbf16, #tpu.memory_space<vmem>>, %arg4: memref<1x1x16x8xbf16, #tpu.memory_space<vmem>>, %arg5: memref<1x1x16x8xbf16, #tpu.memory_space<vmem>>, %arg6: memref<1x1x16x8xbf16, #tpu.memory_space<vmem>>, %arg7: memref<1x1x16x8xbf16, #tpu.memory_space<vmem>>, %arg8: memref<144x8xbf16, #tpu.memory_space<vmem>>, %arg9: memref<1x8xf32, #tpu.memory_space<vmem>>, %arg10: memref<1x1x64x8xbf16, #tpu.memory_space<vmem>>, %arg11: memref<1x1x64x8xbf16, #tpu.memory_space<vmem>>) attributes {dimension_semantics = [#tpu.dimension_semantics<parallel>, #tpu.dimension_semantics<parallel>], iteration_bounds = array<i64: 2, 4>, scalar_prefetch = 0 : i64, scratch_operands = 0 : i64, tpu.core_type = #tpu.core_type<tc>, window_params = [{transform_indices = @transform_0, window_bounds = array<i64: 1, 4, 16, 8>}, {transform_indices = @transform_1, window_bounds = array<i64: 1, 4, 16, 8>}, {transform_indices = @transform_2, window_bounds = array<i64: 1, 1, 16, 8>}, {transform_indices = @transform_3, window_bounds = array<i64: 1, 1, 16, 8>}, {transform_indices = @transform_4, window_bounds = array<i64: 1, 1, 16, 8>}, {transform_indices = @transform_5, window_bounds = array<i64: 1, 1, 16, 8>}, {pipeline_mode = #tpu.pipeline_mode<synchronous>, transform_indices = @transform_6, window_bounds = array<i64: 144, 8>}, {pipeline_mode = #tpu.pipeline_mode<synchronous>, transform_indices = @transform_7, window_bounds = array<i64: 1, 8>}, {transform_indices = @transform_8, window_bounds = array<i64: 1, 1, 64, 8>}, {transform_indices = @transform_9, window_bounds = array<i64: 1, 1, 64, 8>}]} {
    %c0_i32 = arith.constant 0 : i32
    %0 = arith.cmpi eq, %arg1, %c0_i32 : i32
    %cst = arith.constant 0.000000e+00 : f32
    %cst_0 = arith.constant 1.000000e+00 : f32
    %1 = arith.select %0, %cst, %cst_0 : f32
    %2 = arith.truncf %1 : f32 to bf16
    %c3_i32 = arith.constant 3 : i32
    %3 = arith.cmpi eq, %arg1, %c3_i32 : i32
    %cst_1 = arith.constant 0.000000e+00 : f32
    %cst_2 = arith.constant 1.000000e+00 : f32
    %4 = arith.select %3, %cst_1, %cst_2 : f32
    %5 = arith.truncf %4 : f32 to bf16
    %c0 = arith.constant 0 : index
    %c0_3 = arith.constant 0 : index
    %c0_4 = arith.constant 0 : index
    %c0_5 = arith.constant 0 : index
    %6 = vector.load %arg2[%c0, %c0_3, %c0_4, %c0_5] : memref<1x4x16x8xbf16, #tpu.memory_space<vmem>>, vector<1x4x16x8xbf16>
    %7 = vector.shape_cast %6 : vector<1x4x16x8xbf16> to vector<4x16x8xbf16>
    %c0_6 = arith.constant 0 : index
    %c0_7 = arith.constant 0 : index
    %c0_8 = arith.constant 0 : index
    %c0_9 = arith.constant 0 : index
    %8 = vector.load %arg4[%c0_6, %c0_7, %c0_8, %c0_9] : memref<1x1x16x8xbf16, #tpu.memory_space<vmem>>, vector<1x1x16x8xbf16>
    %9 = vector.shape_cast %8 : vector<1x1x16x8xbf16> to vector<16x8xbf16>
    %10 = vector.broadcast %2 : bf16 to vector<16x8xbf16>
    %11 = arith.mulf %9, %10 : vector<16x8xbf16>
    %c0_10 = arith.constant 0 : index
    %c0_11 = arith.constant 0 : index
    %c0_12 = arith.constant 0 : index
    %c0_13 = arith.constant 0 : index
    %12 = vector.load %arg6[%c0_10, %c0_11, %c0_12, %c0_13] : memref<1x1x16x8xbf16, #tpu.memory_space<vmem>>, vector<1x1x16x8xbf16>
    %13 = vector.shape_cast %12 : vector<1x1x16x8xbf16> to vector<16x8xbf16>
    %14 = vector.broadcast %5 : bf16 to vector<16x8xbf16>
    %15 = arith.mulf %13, %14 : vector<16x8xbf16>
    %16 = vector.shape_cast %11 : vector<16x8xbf16> to vector<1x16x8xbf16>
    %17 = vector.shape_cast %15 : vector<16x8xbf16> to vector<1x16x8xbf16>
    %18 = tpu.concatenate %16, %7, %17 in 0 : vector<1x16x8xbf16>, vector<4x16x8xbf16>, vector<1x16x8xbf16> -> vector<6x16x8xbf16>
    %cst_14 = arith.constant 0.000000e+00 : bf16
    %19 = vector.broadcast %cst_14 : bf16 to vector<6x1x8xbf16>
    %20 = tpu.concatenate %19, %18, %19 in 1 : vector<6x1x8xbf16>, vector<6x16x8xbf16>, vector<6x1x8xbf16> -> vector<6x18x8xbf16>
    %c0_15 = arith.constant 0 : index
    %c0_16 = arith.constant 0 : index
    %c0_17 = arith.constant 0 : index
    %c0_18 = arith.constant 0 : index
    %21 = vector.load %arg3[%c0_15, %c0_16, %c0_17, %c0_18] : memref<1x4x16x8xbf16, #tpu.memory_space<vmem>>, vector<1x4x16x8xbf16>
    %22 = vector.shape_cast %21 : vector<1x4x16x8xbf16> to vector<4x16x8xbf16>
    %c0_19 = arith.constant 0 : index
    %c0_20 = arith.constant 0 : index
    %c0_21 = arith.constant 0 : index
    %c0_22 = arith.constant 0 : index
    %23 = vector.load %arg5[%c0_19, %c0_20, %c0_21, %c0_22] : memref<1x1x16x8xbf16, #tpu.memory_space<vmem>>, vector<1x1x16x8xbf16>
    %24 = vector.shape_cast %23 : vector<1x1x16x8xbf16> to vector<16x8xbf16>
    %25 = vector.broadcast %2 : bf16 to vector<16x8xbf16>
    %26 = arith.mulf %24, %25 : vector<16x8xbf16>
    %c0_23 = arith.constant 0 : index
    %c0_24 = arith.constant 0 : index
    %c0_25 = arith.constant 0 : index
    %c0_26 = arith.constant 0 : index
    %27 = vector.load %arg7[%c0_23, %c0_24, %c0_25, %c0_26] : memref<1x1x16x8xbf16, #tpu.memory_space<vmem>>, vector<1x1x16x8xbf16>
    %28 = vector.shape_cast %27 : vector<1x1x16x8xbf16> to vector<16x8xbf16>
    %29 = vector.broadcast %5 : bf16 to vector<16x8xbf16>
    %30 = arith.mulf %28, %29 : vector<16x8xbf16>
    %31 = vector.shape_cast %26 : vector<16x8xbf16> to vector<1x16x8xbf16>
    %32 = vector.shape_cast %30 : vector<16x8xbf16> to vector<1x16x8xbf16>
    %33 = tpu.concatenate %31, %22, %32 in 0 : vector<1x16x8xbf16>, vector<4x16x8xbf16>, vector<1x16x8xbf16> -> vector<6x16x8xbf16>
    %cst_27 = arith.constant 0.000000e+00 : bf16
    %34 = vector.broadcast %cst_27 : bf16 to vector<6x1x8xbf16>
    %35 = tpu.concatenate %34, %33, %34 in 1 : vector<6x1x8xbf16>, vector<6x16x8xbf16>, vector<6x1x8xbf16> -> vector<6x18x8xbf16>
    %36 = vector.extract_strided_slice %20 {offsets = [0, 0, 0], sizes = [4, 16, 8], strides = [1, 1, 1]} : vector<6x18x8xbf16> to vector<4x16x8xbf16>
    %37 = vector.shape_cast %36 : vector<4x16x8xbf16> to vector<64x8xbf16>
    %38 = vector.extract_strided_slice %35 {offsets = [0, 0, 0], sizes = [4, 16, 8], strides = [1, 1, 1]} : vector<6x18x8xbf16> to vector<4x16x8xbf16>
    %39 = vector.shape_cast %38 : vector<4x16x8xbf16> to vector<64x8xbf16>
    %40 = vector.extract_strided_slice %20 {offsets = [0, 1, 0], sizes = [4, 16, 8], strides = [1, 1, 1]} : vector<6x18x8xbf16> to vector<4x16x8xbf16>
    %41 = vector.shape_cast %40 : vector<4x16x8xbf16> to vector<64x8xbf16>
    %42 = vector.extract_strided_slice %35 {offsets = [0, 1, 0], sizes = [4, 16, 8], strides = [1, 1, 1]} : vector<6x18x8xbf16> to vector<4x16x8xbf16>
    %43 = vector.shape_cast %42 : vector<4x16x8xbf16> to vector<64x8xbf16>
    %44 = vector.extract_strided_slice %20 {offsets = [0, 2, 0], sizes = [4, 16, 8], strides = [1, 1, 1]} : vector<6x18x8xbf16> to vector<4x16x8xbf16>
    %45 = vector.shape_cast %44 : vector<4x16x8xbf16> to vector<64x8xbf16>
    %46 = vector.extract_strided_slice %35 {offsets = [0, 2, 0], sizes = [4, 16, 8], strides = [1, 1, 1]} : vector<6x18x8xbf16> to vector<4x16x8xbf16>
    %47 = vector.shape_cast %46 : vector<4x16x8xbf16> to vector<64x8xbf16>
    %48 = vector.extract_strided_slice %20 {offsets = [1, 0, 0], sizes = [4, 16, 8], strides = [1, 1, 1]} : vector<6x18x8xbf16> to vector<4x16x8xbf16>
    %49 = vector.shape_cast %48 : vector<4x16x8xbf16> to vector<64x8xbf16>
    %50 = vector.extract_strided_slice %35 {offsets = [1, 0, 0], sizes = [4, 16, 8], strides = [1, 1, 1]} : vector<6x18x8xbf16> to vector<4x16x8xbf16>
    %51 = vector.shape_cast %50 : vector<4x16x8xbf16> to vector<64x8xbf16>
    %52 = vector.extract_strided_slice %20 {offsets = [1, 1, 0], sizes = [4, 16, 8], strides = [1, 1, 1]} : vector<6x18x8xbf16> to vector<4x16x8xbf16>
    %53 = vector.shape_cast %52 : vector<4x16x8xbf16> to vector<64x8xbf16>
    %54 = vector.extract_strided_slice %35 {offsets = [1, 1, 0], sizes = [4, 16, 8], strides = [1, 1, 1]} : vector<6x18x8xbf16> to vector<4x16x8xbf16>
    %55 = vector.shape_cast %54 : vector<4x16x8xbf16> to vector<64x8xbf16>
    %56 = vector.extract_strided_slice %20 {offsets = [1, 2, 0], sizes = [4, 16, 8], strides = [1, 1, 1]} : vector<6x18x8xbf16> to vector<4x16x8xbf16>
    %57 = vector.shape_cast %56 : vector<4x16x8xbf16> to vector<64x8xbf16>
    %58 = vector.extract_strided_slice %35 {offsets = [1, 2, 0], sizes = [4, 16, 8], strides = [1, 1, 1]} : vector<6x18x8xbf16> to vector<4x16x8xbf16>
    %59 = vector.shape_cast %58 : vector<4x16x8xbf16> to vector<64x8xbf16>
    %60 = vector.extract_strided_slice %20 {offsets = [2, 0, 0], sizes = [4, 16, 8], strides = [1, 1, 1]} : vector<6x18x8xbf16> to vector<4x16x8xbf16>
    %61 = vector.shape_cast %60 : vector<4x16x8xbf16> to vector<64x8xbf16>
    %62 = vector.extract_strided_slice %35 {offsets = [2, 0, 0], sizes = [4, 16, 8], strides = [1, 1, 1]} : vector<6x18x8xbf16> to vector<4x16x8xbf16>
    %63 = vector.shape_cast %62 : vector<4x16x8xbf16> to vector<64x8xbf16>
    %64 = vector.extract_strided_slice %20 {offsets = [2, 1, 0], sizes = [4, 16, 8], strides = [1, 1, 1]} : vector<6x18x8xbf16> to vector<4x16x8xbf16>
    %65 = vector.shape_cast %64 : vector<4x16x8xbf16> to vector<64x8xbf16>
    %66 = vector.extract_strided_slice %35 {offsets = [2, 1, 0], sizes = [4, 16, 8], strides = [1, 1, 1]} : vector<6x18x8xbf16> to vector<4x16x8xbf16>
    %67 = vector.shape_cast %66 : vector<4x16x8xbf16> to vector<64x8xbf16>
    %68 = vector.extract_strided_slice %20 {offsets = [2, 2, 0], sizes = [4, 16, 8], strides = [1, 1, 1]} : vector<6x18x8xbf16> to vector<4x16x8xbf16>
    %69 = vector.shape_cast %68 : vector<4x16x8xbf16> to vector<64x8xbf16>
    %70 = vector.extract_strided_slice %35 {offsets = [2, 2, 0], sizes = [4, 16, 8], strides = [1, 1, 1]} : vector<6x18x8xbf16> to vector<4x16x8xbf16>
    %71 = vector.shape_cast %70 : vector<4x16x8xbf16> to vector<64x8xbf16>
    %72 = tpu.concatenate %37, %39, %41, %43, %45, %47, %49, %51, %53, %55, %57, %59, %61, %63, %65, %67 in 1 : vector<64x8xbf16>, vector<64x8xbf16>, vector<64x8xbf16>, vector<64x8xbf16>, vector<64x8xbf16>, vector<64x8xbf16>, vector<64x8xbf16>, vector<64x8xbf16>, vector<64x8xbf16>, vector<64x8xbf16>, vector<64x8xbf16>, vector<64x8xbf16>, vector<64x8xbf16>, vector<64x8xbf16>, vector<64x8xbf16>, vector<64x8xbf16> -> vector<64x128xbf16>
    %73 = tpu.concatenate %69, %71 in 1 : vector<64x8xbf16>, vector<64x8xbf16> -> vector<64x16xbf16>
    %74 = tpu.concatenate %72, %73 in 1 : vector<64x128xbf16>, vector<64x16xbf16> -> vector<64x144xbf16>
    %c0_28 = arith.constant 0 : index
    %c0_29 = arith.constant 0 : index
    %75 = vector.load %arg8[%c0_28, %c0_29] : memref<144x8xbf16, #tpu.memory_space<vmem>>, vector<144x8xbf16>
    %cst_30 = arith.constant dense<0.000000e+00> : vector<64x8xf32>
    %76 = tpu.matmul %74, %75, %cst_30 {dimension_numbers = #tpu.dot_dimension_numbers<[1], [0], [0], [1], [0, 0, 1, 1], [], []>} : vector<64x144xbf16>, vector<144x8xbf16>, vector<64x8xf32> -> vector<64x8xf32>
    %c0_31 = arith.constant 0 : index
    %c0_32 = arith.constant 0 : index
    %77 = vector.load %arg9[%c0_31, %c0_32] : memref<1x8xf32, #tpu.memory_space<vmem>>, vector<1x8xf32>
    %78 = vector.broadcast %77 : vector<1x8xf32> to vector<64x8xf32>
    %79 = arith.addf %76, %78 : vector<64x8xf32>
    %cst_33 = arith.constant 0.000000e+00 : f32
    %80 = vector.broadcast %cst_33 : f32 to vector<64x8xf32>
    %81 = arith.cmpf oge, %79, %80 : vector<64x8xf32>
    %cst_34 = arith.constant 0.00999999977 : f32
    %82 = vector.broadcast %cst_34 : f32 to vector<64x8xf32>
    %83 = arith.mulf %82, %79 : vector<64x8xf32>
    %84 = arith.select %81, %79, %83 : vector<64x8xi1>, vector<64x8xf32>
    %cst_35 = arith.constant 5.000000e-01 : f32
    %85 = vector.broadcast %cst_35 : f32 to vector<64x8xf32>
    %86 = arith.mulf %84, %85 : vector<64x8xf32>
    %c0_36 = arith.constant 0 : index
    %c0_37 = arith.constant 0 : index
    %c0_38 = arith.constant 0 : index
    %c0_39 = arith.constant 0 : index
    %87 = vector.load %arg10[%c0_36, %c0_37, %c0_38, %c0_39] : memref<1x1x64x8xbf16, #tpu.memory_space<vmem>>, vector<1x1x64x8xbf16>
    %88 = vector.shape_cast %87 : vector<1x1x64x8xbf16> to vector<64x8xbf16>
    %89 = arith.extf %88 : vector<64x8xbf16> to vector<64x8xf32>
    %cst_40 = arith.constant 3.000000e-01 : f32
    %90 = vector.broadcast %cst_40 : f32 to vector<64x8xf32>
    %91 = arith.mulf %89, %90 : vector<64x8xf32>
    %92 = arith.addf %86, %91 : vector<64x8xf32>
    %93 = arith.truncf %92 : vector<64x8xf32> to vector<64x8xbf16>
    %c0_41 = arith.constant 0 : index
    %c0_42 = arith.constant 0 : index
    %c0_43 = arith.constant 0 : index
    %c0_44 = arith.constant 0 : index
    %94 = vector.load %arg11[%c0_41, %c0_42, %c0_43, %c0_44] : memref<1x1x64x8xbf16, #tpu.memory_space<vmem>>, vector<1x1x64x8xbf16>
    %95 = vector.shape_cast %94 : vector<1x1x64x8xbf16> to vector<64x8xbf16>
    %96 = vector.shape_cast %93 : vector<64x8xbf16> to vector<1x1x64x8xbf16>
    tpu.vector_store %arg11[%c0_41, %c0_42, %c0_43, %c0_44], %96 {strides = array<i32>} : memref<1x1x64x8xbf16, #tpu.memory_space<vmem>>, vector<1x1x64x8xbf16>,
    return
  }
  func.func @transform_0(%arg0: i32, %arg1: i32) -> (i32, i32, i32, i32) {
    %c0_i32 = arith.constant 0 : i32
    %c0_i32_0 = arith.constant 0 : i32
    %c0_i32_1 = arith.constant 0 : i32
    return %arg0, %arg1, %c0_i32, %c0_i32_0 : i32, i32, i32, i32
  }
  func.func @transform_1(%arg0: i32, %arg1: i32) -> (i32, i32, i32, i32) {
    %c0_i32 = arith.constant 0 : i32
    %c0_i32_0 = arith.constant 0 : i32
    %c0_i32_1 = arith.constant 0 : i32
    return %arg0, %arg1, %c0_i32, %c0_i32_0 : i32, i32, i32, i32
  }
  func.func @transform_2(%arg0: i32, %arg1: i32) -> (i32, i32, i32, i32) {
    %c4_i32 = arith.constant 4 : i32
    %0 = arith.muli %arg1, %c4_i32 : i32
    %c1_i32 = arith.constant 1 : i32
    %1 = arith.subi %0, %c1_i32 : i32
    %c0_i32 = arith.constant 0 : i32
    %2 = arith.maxsi %1, %c0_i32 : i32
    %c0_i32_0 = arith.constant 0 : i32
    %c0_i32_1 = arith.constant 0 : i32
    %c0_i32_2 = arith.constant 0 : i32
    return %arg0, %2, %c0_i32_0, %c0_i32_1 : i32, i32, i32, i32
  }
  func.func @transform_3(%arg0: i32, %arg1: i32) -> (i32, i32, i32, i32) {
    %c4_i32 = arith.constant 4 : i32
    %0 = arith.muli %arg1, %c4_i32 : i32
    %c1_i32 = arith.constant 1 : i32
    %1 = arith.subi %0, %c1_i32 : i32
    %c0_i32 = arith.constant 0 : i32
    %2 = arith.maxsi %1, %c0_i32 : i32
    %c0_i32_0 = arith.constant 0 : i32
    %c0_i32_1 = arith.constant 0 : i32
    %c0_i32_2 = arith.constant 0 : i32
    return %arg0, %2, %c0_i32_0, %c0_i32_1 : i32, i32, i32, i32
  }
  func.func @transform_4(%arg0: i32, %arg1: i32) -> (i32, i32, i32, i32) {
    %c4_i32 = arith.constant 4 : i32
    %0 = arith.muli %arg1, %c4_i32 : i32
    %c4_i32_0 = arith.constant 4 : i32
    %1 = arith.addi %0, %c4_i32_0 : i32
    %c15_i32 = arith.constant 15 : i32
    %2 = arith.minsi %1, %c15_i32 : i32
    %c0_i32 = arith.constant 0 : i32
    %c0_i32_1 = arith.constant 0 : i32
    %c0_i32_2 = arith.constant 0 : i32
    return %arg0, %2, %c0_i32, %c0_i32_1 : i32, i32, i32, i32
  }
  func.func @transform_5(%arg0: i32, %arg1: i32) -> (i32, i32, i32, i32) {
    %c4_i32 = arith.constant 4 : i32
    %0 = arith.muli %arg1, %c4_i32 : i32
    %c4_i32_0 = arith.constant 4 : i32
    %1 = arith.addi %0, %c4_i32_0 : i32
    %c15_i32 = arith.constant 15 : i32
    %2 = arith.minsi %1, %c15_i32 : i32
    %c0_i32 = arith.constant 0 : i32
    %c0_i32_1 = arith.constant 0 : i32
    %c0_i32_2 = arith.constant 0 : i32
    return %arg0, %2, %c0_i32, %c0_i32_1 : i32, i32, i32, i32
  }
  func.func @transform_6(%arg0: i32, %arg1: i32) -> (i32, i32) {
    %c0_i32 = arith.constant 0 : i32
    %c0_i32_0 = arith.constant 0 : i32
    %c0_i32_1 = arith.constant 0 : i32
    return %c0_i32, %c0_i32_0 : i32, i32
  }
  func.func @transform_7(%arg0: i32, %arg1: i32) -> (i32, i32) {
    %c0_i32 = arith.constant 0 : i32
    %c0_i32_0 = arith.constant 0 : i32
    %c0_i32_1 = arith.constant 0 : i32
    return %c0_i32, %c0_i32_0 : i32, i32
  }
  func.func @transform_8(%arg0: i32, %arg1: i32) -> (i32, i32, i32, i32) {
    %c0_i32 = arith.constant 0 : i32
    %c0_i32_0 = arith.constant 0 : i32
    %c0_i32_1 = arith.constant 0 : i32
    return %arg0, %arg1, %c0_i32, %c0_i32_0 : i32, i32, i32, i32
  }
  func.func @transform_9(%arg0: i32, %arg1: i32) -> (i32, i32, i32, i32) {
    %c0_i32 = arith.constant 0 : i32
    %c0_i32_0 = arith.constant 0 : i32
    %c0_i32_1 = arith.constant 0 : i32
    return %arg0, %arg1, %c0_i32, %c0_i32_0 : i32, i32, i32, i32
  }
}

</mosaic_0001>

<llo_original>
// kernel: _lambda_.1
$region0: #{_lambda_.1}
  #allocation0 [shape = 'u32[]', space=smem, size = 0x4, offset = 0x4, fixed_abs, tag = 'smem constant byte address 0x4 - core index']
  #allocation1 [shape = 'u32[72,128]{1,0:T(1,128)}', space=vmem, size = 0x9000, scoped, tag = 'internal scratch']
  %s0 = inlined_call_operand.vmem [shape: bf16[2,16,16,8], index: 0, kind: input, shape index: {}, may-alias: {0,2,4}]
  %s1 = inlined_call_operand.vmem [shape: bf16[2,16,16,8], index: 1, kind: input, shape index: {}, may-alias: {1,3,5}]
  %s2 = inlined_call_operand.vmem [shape: bf16[2,16,16,8], index: 2, kind: input, shape index: {}, may-alias: {0,2,4}]
  %s3 = inlined_call_operand.vmem [shape: bf16[2,16,16,8], index: 3, kind: input, shape index: {}, may-alias: {1,3,5}]
  %s4 = inlined_call_operand.vmem [shape: bf16[2,16,16,8], index: 4, kind: input, shape index: {}, may-alias: {0,2,4}]
  %s5 = inlined_call_operand.vmem [shape: bf16[2,16,16,8], index: 5, kind: input, shape index: {}, may-alias: {1,3,5}]
  %s6 = inlined_call_operand.vmem [shape: bf16[144,8], index: 6, kind: input, shape index: {}]
  %s7 = inlined_call_operand.vmem [shape: f32[1,8], index: 7, kind: input, shape index: {}]
  %s8 = inlined_call_operand.vmem [shape: bf16[2,4,64,8], index: 8, kind: input, shape index: {}]
  %s9 = inlined_call_operand.vmem [shape: bf16[2,4,64,8], index: 9, kind: output, shape index: {}]
  %s10 = sld [smem:[#allocation0]]
  $region69: #{_lambda_.1} parent=0
    _
  %s12 = ssub.s32 1, %s10
  %s13 = scalar_select 0, %s12, %s10
  loop: start=0, step=1, limit=10
  $region2: #{_lambda_.1} parent=0 // loop_pre_header
    _
  $region3: #{_lambda_.1} parent=0 // loop_header
    %s15 = sphi 0, %s19
    %p16 = scmp.ge.s32.totalorder %s15, 10
    %s22 = sphi 0, %s34
    %s23 = sphi 0, %s30
    %s24 = sphi 0, %s22
    %s25 = sphi 0, %s23
    %s26 = sphi 0, %s24
    %s27 = sphi 0, %s25
    %s39 = sphi 0, %s41
    %s42 = sphi 0, %s39
    %s43 = sphi 0, %s42
    %s59 = sphi 0, %s43
    %s67 = sphi 0, %s69
    %s70 = sphi 0, %s67
    %s71 = sphi 0, %s70
    %s87 = sphi 0, %s71
    %s103 = sphi 0, %s105
    %s106 = sphi 0, %s103
    %s107 = sphi 0, %s106
    %s123 = sphi 0, %s107
    %s139 = sphi 0, %s141
    %s142 = sphi 0, %s139
    %s143 = sphi 0, %s142
    %s159 = sphi 0, %s143
    %s175 = sphi 0, %s177
    %s178 = sphi 0, %s175
    %s179 = sphi 0, %s178
    %s195 = sphi 0, %s179
    %s211 = sphi 0, %s213
    %s214 = sphi 0, %s211
    %s215 = sphi 0, %s214
    %s231 = sphi 0, %s215
    %s235 = sphi 0, %s235
    %s237 = sphi 0, %s235
    %s238 = sphi 0, %s237
    %s252 = sphi 0, %s238
    %s256 = sphi 0, %s256
    %s258 = sphi 0, %s256
    %s259 = sphi 0, %s258
    %s273 = sphi 0, %s259
    %s281 = sphi 0, %s283
    %s284 = sphi 0, %s281
    %s285 = sphi 0, %s284
    %s301 = sphi 0, %s285
    %s309 = sphi 0, %s311
    %s312 = sphi 0, %s309
    %s313 = sphi 0, %s312
    %s329 = sphi 0, %s313
  $region4: #{_lambda_.1} parent=0 // loop_header_branch
    %18 = sbr.rel (%p16) target = $region8
  $region5: #{_lambda_.1} parent=0 // loop_body
    %s20 = ssub.s32 %s15, 1
    %s21 = ssub.s32 %s15, 2
    %s28 = sadd.s32 1, %s23
    %p29 = scmp.ge.s32.totalorder %s28, 4
    %s30 = scalar_select %p29, 0, %s28
    %s31 = sadd.s32 1, %s22
    %s32 = scalar_select %p29, %s31, %s22
    %p33 = scmp.ge.s32.totalorder %s32, 2
    %s34 = scalar_select %p33, 0, %s32
    %s35 = ssub.s32 %s22, %s34
    %s36 = ssub.s32 %s23, %s30
    %s37 = sor.u32 %s35, %s36
    %p38 = scmp.eq.s32.totalorder %s37, 0
    %s40 = sadd.s32 %s39, 1
    %s41 = scalar_select %p38, %s39, %s40
    %p44 = pneg %p38
    %p45 = scmp.eq.s32.totalorder %s15, 7
    %p46 = por %p44, %p45
    %p47 = scmp.ne.s32.totalorder %s39, %s42
    %p48 = scmp.eq.s32.totalorder %s15, 0
    %p49 = por %p47, %p48
    %p50 = scmp.ne.s32.totalorder %s39, %s42
    %p51 = scmp.eq.s32.totalorder %s20, 7
    %p52 = por %p50, %p51
    %p53 = scmp.ne.s32.totalorder %s42, %s43
    %p54 = scmp.eq.s32.totalorder %s20, 0
    %p55 = por %p53, %p54
    %p56 = scmp.ne.s32.totalorder %s42, %s43
    %p57 = scmp.eq.s32.totalorder %s21, 7
    %p58 = por %p56, %p57
    %p60 = scmp.ne.s32.totalorder %s43, %s59
    %p61 = scmp.eq.s32.totalorder %s21, 0
    %p62 = por %p60, %p61
    %s63 = ssub.s32 %s22, %s34
    %s64 = ssub.s32 %s23, %s30
    %s65 = sor.u32 %s63, %s64
    %p66 = scmp.eq.s32.totalorder %s65, 0
    %s68 = sadd.s32 %s67, 1
    %s69 = scalar_select %p66, %s67, %s68
    %p72 = pneg %p66
    %p73 = scmp.eq.s32.totalorder %s15, 7
    %p74 = por %p72, %p73
    %p75 = scmp.ne.s32.totalorder %s67, %s70
    %p76 = scmp.eq.s32.totalorder %s15, 0
    %p77 = por %p75, %p76
    %p78 = scmp.ne.s32.totalorder %s67, %s70
    %p79 = scmp.eq.s32.totalorder %s20, 7
    %p80 = por %p78, %p79
    %p81 = scmp.ne.s32.totalorder %s70, %s71
    %p82 = scmp.eq.s32.totalorder %s20, 0
    %p83 = por %p81, %p82
    %p84 = scmp.ne.s32.totalorder %s70, %s71
    %p85 = scmp.eq.s32.totalorder %s21, 7
    %p86 = por %p84, %p85
    %p88 = scmp.ne.s32.totalorder %s71, %s87
    %p89 = scmp.eq.s32.totalorder %s21, 0
    %p90 = por %p88, %p89
    %s91 = smul.u32 %s23, 4
    %s92 = ssub.s32 %s91, 1
    %p93 = scmp.gt.s32.totalorder %s92, 0
    %s94 = scalar_select %p93, %s92, 0
    %s95 = smul.u32 %s30, 4
    %s96 = ssub.s32 %s95, 1
    %p97 = scmp.gt.s32.totalorder %s96, 0
    %s98 = scalar_select %p97, %s96, 0
    %s99 = ssub.s32 %s22, %s34
    %s100 = ssub.s32 %s94, %s98
    %s101 = sor.u32 %s99, %s100
    %p102 = scmp.eq.s32.totalorder %s101, 0
    %s104 = sadd.s32 %s103, 1
    %s105 = scalar_select %p102, %s103, %s104
    %p108 = pneg %p102
    %p109 = scmp.eq.s32.totalorder %s15, 7
    %p110 = por %p108, %p109
    %p111 = scmp.ne.s32.totalorder %s103, %s106
    %p112 = scmp.eq.s32.totalorder %s15, 0
    %p113 = por %p111, %p112
    %p114 = scmp.ne.s32.totalorder %s103, %s106
    %p115 = scmp.eq.s32.totalorder %s20, 7
    %p116 = por %p114, %p115
    %p117 = scmp.ne.s32.totalorder %s106, %s107
    %p118 = scmp.eq.s32.totalorder %s20, 0
    %p119 = por %p117, %p118
    %p120 = scmp.ne.s32.totalorder %s106, %s107
    %p121 = scmp.eq.s32.totalorder %s21, 7
    %p122 = por %p120, %p121
    %p124 = scmp.ne.s32.totalorder %s107, %s123
    %p125 = scmp.eq.s32.totalorder %s21, 0
    %p126 = por %p124, %p125
    %s127 = smul.u32 %s23, 4
    %s128 = ssub.s32 %s127, 1
    %p129 = scmp.gt.s32.totalorder %s128, 0
    %s130 = scalar_select %p129, %s128, 0
    %s131 = smul.u32 %s30, 4
    %s132 = ssub.s32 %s131, 1
    %p133 = scmp.gt.s32.totalorder %s132, 0
    %s134 = scalar_select %p133, %s132, 0
    %s135 = ssub.s32 %s22, %s34
    %s136 = ssub.s32 %s130, %s134
    %s137 = sor.u32 %s135, %s136
    %p138 = scmp.eq.s32.totalorder %s137, 0
    %s140 = sadd.s32 %s139, 1
    %s141 = scalar_select %p138, %s139, %s140
    %p144 = pneg %p138
    %p145 = scmp.eq.s32.totalorder %s15, 7
    %p146 = por %p144, %p145
    %p147 = scmp.ne.s32.totalorder %s139, %s142
    %p148 = scmp.eq.s32.totalorder %s15, 0
    %p149 = por %p147, %p148
    %p150 = scmp.ne.s32.totalorder %s139, %s142
    %p151 = scmp.eq.s32.totalorder %s20, 7
    %p152 = por %p150, %p151
    %p153 = scmp.ne.s32.totalorder %s142, %s143
    %p154 = scmp.eq.s32.totalorder %s20, 0
    %p155 = por %p153, %p154
    %p156 = scmp.ne.s32.totalorder %s142, %s143
    %p157 = scmp.eq.s32.totalorder %s21, 7
    %p158 = por %p156, %p157
    %p160 = scmp.ne.s32.totalorder %s143, %s159
    %p161 = scmp.eq.s32.totalorder %s21, 0
    %p162 = por %p160, %p161
    %s163 = smul.u32 %s23, 4
    %s164 = sadd.s32 %s163, 4
    %p165 = scmp.lt.s32.totalorder %s164, 15
    %s166 = scalar_select %p165, %s164, 15
    %s167 = smul.u32 %s30, 4
    %s168 = sadd.s32 %s167, 4
    %p169 = scmp.lt.s32.totalorder %s168, 15
    %s170 = scalar_select %p169, %s168, 15
    %s171 = ssub.s32 %s22, %s34
    %s172 = ssub.s32 %s166, %s170
    %s173 = sor.u32 %s171, %s172
    %p174 = scmp.eq.s32.totalorder %s173, 0
    %s176 = sadd.s32 %s175, 1
    %s177 = scalar_select %p174, %s175, %s176
    %p180 = pneg %p174
    %p181 = scmp.eq.s32.totalorder %s15, 7
    %p182 = por %p180, %p181
    %p183 = scmp.ne.s32.totalorder %s175, %s178
    %p184 = scmp.eq.s32.totalorder %s15, 0
    %p185 = por %p183, %p184
    %p186 = scmp.ne.s32.totalorder %s175, %s178
    %p187 = scmp.eq.s32.totalorder %s20, 7
    %p188 = por %p186, %p187
    %p189 = scmp.ne.s32.totalorder %s178, %s179
    %p190 = scmp.eq.s32.totalorder %s20, 0
    %p191 = por %p189, %p190
    %p192 = scmp.ne.s32.totalorder %s178, %s179
    %p193 = scmp.eq.s32.totalorder %s21, 7
    %p194 = por %p192, %p193
    %p196 = scmp.ne.s32.totalorder %s179, %s195
    %p197 = scmp.eq.s32.totalorder %s21, 0
    %p198 = por %p196, %p197
    %s199 = smul.u32 %s23, 4
    %s200 = sadd.s32 %s199, 4
    %p201 = scmp.lt.s32.totalorder %s200, 15
    %s202 = scalar_select %p201, %s200, 15
    %s203 = smul.u32 %s30, 4
    %s204 = sadd.s32 %s203, 4
    %p205 = scmp.lt.s32.totalorder %s204, 15
    %s206 = scalar_select %p205, %s204, 15
    %s207 = ssub.s32 %s22, %s34
    %s208 = ssub.s32 %s202, %s206
    %s209 = sor.u32 %s207, %s208
    %p210 = scmp.eq.s32.totalorder %s209, 0
    %s212 = sadd.s32 %s211, 1
    %s213 = scalar_select %p210, %s211, %s212
    %p216 = pneg %p210
    %p217 = scmp.eq.s32.totalorder %s15, 7
    %p218 = por %p216, %p217
    %p219 = scmp.ne.s32.totalorder %s211, %s214
    %p220 = scmp.eq.s32.totalorder %s15, 0
    %p221 = por %p219, %p220
    %p222 = scmp.ne.s32.totalorder %s211, %s214
    %p223 = scmp.eq.s32.totalorder %s20, 7
    %p224 = por %p222, %p223
    %p225 = scmp.ne.s32.totalorder %s214, %s215
    %p226 = scmp.eq.s32.totalorder %s20, 0
    %p227 = por %p225, %p226
    %p228 = scmp.ne.s32.totalorder %s214, %s215
    %p229 = scmp.eq.s32.totalorder %s21, 7
    %p230 = por %p228, %p229
    %p232 = scmp.ne.s32.totalorder %s215, %s231
    %p233 = scmp.eq.s32.totalorder %s21, 0
    %p234 = por %p232, %p233
    %s236 = sadd.s32 %s235, 1
    %p239 = scmp.eq.s32.totalorder %s15, 7
    %p240 = scmp.ne.s32.totalorder %s235, %s237
    %p241 = scmp.eq.s32.totalorder %s15, 0
    %p242 = por %p240, %p241
    %p243 = scmp.ne.s32.totalorder %s235, %s237
    %p244 = scmp.eq.s32.totalorder %s20, 7
    %p245 = por %p243, %p244
    %p246 = scmp.ne.s32.totalorder %s237, %s238
    %p247 = scmp.eq.s32.totalorder %s20, 0
    %p248 = por %p246, %p247
    %p249 = scmp.ne.s32.totalorder %s237, %s238
    %p250 = scmp.eq.s32.totalorder %s21, 7
    %p251 = por %p249, %p250
    %p253 = scmp.ne.s32.totalorder %s238, %s252
    %p254 = scmp.eq.s32.totalorder %s21, 0
    %p255 = por %p253, %p254
    %s257 = sadd.s32 %s256, 1
    %p260 = scmp.eq.s32.totalorder %s15, 7
    %p261 = scmp.ne.s32.totalorder %s256, %s258
    %p262 = scmp.eq.s32.totalorder %s15, 0
    %p263 = por %p261, %p262
    %p264 = scmp.ne.s32.totalorder %s256, %s258
    %p265 = scmp.eq.s32.totalorder %s20, 7
    %p266 = por %p264, %p265
    %p267 = scmp.ne.s32.totalorder %s258, %s259
    %p268 = scmp.eq.s32.totalorder %s20, 0
    %p269 = por %p267, %p268
    %p270 = scmp.ne.s32.totalorder %s258, %s259
    %p271 = scmp.eq.s32.totalorder %s21, 7
    %p272 = por %p270, %p271
    %p274 = scmp.ne.s32.totalorder %s259, %s273
    %p275 = scmp.eq.s32.totalorder %s21, 0
    %p276 = por %p274, %p275
    %s277 = ssub.s32 %s22, %s34
    %s278 = ssub.s32 %s23, %s30
    %s279 = sor.u32 %s277, %s278
    %p280 = scmp.eq.s32.totalorder %s279, 0
    %s282 = sadd.s32 %s281, 1
    %s283 = scalar_select %p280, %s281, %s282
    %p286 = pneg %p280
    %p287 = scmp.eq.s32.totalorder %s15, 7
    %p288 = por %p286, %p287
    %p289 = scmp.ne.s32.totalorder %s281, %s284
    %p290 = scmp.eq.s32.totalorder %s15, 0
    %p291 = por %p289, %p290
    %p292 = scmp.ne.s32.totalorder %s281, %s284
    %p293 = scmp.eq.s32.totalorder %s20, 7
    %p294 = por %p292, %p293
    %p295 = scmp.ne.s32.totalorder %s284, %s285
    %p296 = scmp.eq.s32.totalorder %s20, 0
    %p297 = por %p295, %p296
    %p298 = scmp.ne.s32.totalorder %s284, %s285
    %p299 = scmp.eq.s32.totalorder %s21, 7
    %p300 = por %p298, %p299
    %p302 = scmp.ne.s32.totalorder %s285, %s301
    %p303 = scmp.eq.s32.totalorder %s21, 0
    %p304 = por %p302, %p303
    %s305 = ssub.s32 %s22, %s34
    %s306 = ssub.s32 %s23, %s30
    %s307 = sor.u32 %s305, %s306
    %p308 = scmp.eq.s32.totalorder %s307, 0
    %s310 = sadd.s32 %s309, 1
    %s311 = scalar_select %p308, %s309, %s310
    %p314 = pneg %p308
    %p315 = scmp.eq.s32.totalorder %s15, 7
    %p316 = por %p314, %p315
    %p317 = scmp.ne.s32.totalorder %s309, %s312
    %p318 = scmp.eq.s32.totalorder %s15, 0
    %p319 = por %p317, %p318
    %p320 = scmp.ne.s32.totalorder %s309, %s312
    %p321 = scmp.eq.s32.totalorder %s20, 7
    %p322 = por %p320, %p321
    %p323 = scmp.ne.s32.totalorder %s312, %s313
    %p324 = scmp.eq.s32.totalorder %s20, 0
    %p325 = por %p323, %p324
    %p326 = scmp.ne.s32.totalorder %s312, %s313
    %p327 = scmp.eq.s32.totalorder %s21, 7
    %p328 = por %p326, %p327
    %p330 = scmp.ne.s32.totalorder %s313, %s329
    %p331 = scmp.eq.s32.totalorder %s21, 0
    %p332 = por %p330, %p331
    %p333 = scmp.le.s32.totalorder 1, %s15
    %p334 = scmp.lt.s32.totalorder %s15, 9
    %p335 = pnand %p333, %p334
    %p336 = pneg %p335
    // Predicated region
    $region9: #{_lambda_.1} parent=5 // pred_check
      _
    $region10: #{_lambda_.1} parent=5 // pred_check_branch
      %338 = sbr.rel (%p335) target = $region12
    $region11: #{_lambda_.1} parent=5 // pred_region
      %s339 = ssub.s32 %s15, 1
      // Predicated region
      $region13: #{_lambda_.1} parent=11 // pred_check
        %p340 = pneg %p248
      $region14: #{_lambda_.1} parent=11 // pred_check_branch
        %342 = sbr.rel (%p340) target = $region16
      $region15: #{_lambda_.1} parent=11 // pred_region
        _
      $region16: #{_lambda_.1} parent=11 // pred_fallthru
        _
      // Predicated region
      $region17: #{_lambda_.1} parent=11 // pred_check
        %p343 = pneg %p269
      $region18: #{_lambda_.1} parent=11 // pred_check_branch
        %345 = sbr.rel (%p343) target = $region20
      $region19: #{_lambda_.1} parent=11 // pred_region
        _
      $region20: #{_lambda_.1} parent=11 // pred_fallthru
        _
    $region12: #{_lambda_.1} parent=5 // pred_fallthru
      _
    %p346 = scmp.lt.s32.totalorder %s15, 8
    // Predicated region
    $region21: #{_lambda_.1} parent=5 // pred_check
      %p347 = pneg %p346
    $region22: #{_lambda_.1} parent=5 // pred_check_branch
      %349 = sbr.rel (%p347) target = $region24
    $region23: #{_lambda_.1} parent=5 // pred_region
      // Predicated region
      $region25: #{_lambda_.1} parent=23 // pred_check
        %p350 = pneg %p49
      $region26: #{_lambda_.1} parent=23 // pred_check_branch
        %352 = sbr.rel (%p350) target = $region28
      $region27: #{_lambda_.1} parent=23 // pred_region
        %s353 = smul.u32 4, %s23
        %p354 = scmp.lt.s32.totalorder %s22, 1
        %s355 = scalar_select %p354, %s22, 1
        %p356 = scmp.lt.s32.totalorder %s353, 15
        %s357 = scalar_select %p356, %s353, 15
        %s358 = smul.addr %s357, 2
        %s359 = smul.addr %s355, 32
        %s360 = sadd.s32 %s358, %s359
        %s361 = smul.addr %s360, 4
        %s362 = scalar_lea.vmem %s0, %s361
        %s363 = smul.u32 4, %s23
      $region28: #{_lambda_.1} parent=23 // pred_fallthru
        _
      // Predicated region
      $region29: #{_lambda_.1} parent=23 // pred_check
        %p364 = pneg %p77
      $region30: #{_lambda_.1} parent=23 // pred_check_branch
        %366 = sbr.rel (%p364) target = $region32
      $region31: #{_lambda_.1} parent=23 // pred_region
        %s367 = smul.u32 4, %s23
        %p368 = scmp.lt.s32.totalorder %s22, 1
        %s369 = scalar_select %p368, %s22, 1
        %p370 = scmp.lt.s32.totalorder %s367, 15
        %s371 = scalar_select %p370, %s367, 15
        %s372 = smul.addr %s371, 2
        %s373 = smul.addr %s369, 32
        %s374 = sadd.s32 %s372, %s373
        %s375 = smul.addr %s374, 4
        %s376 = scalar_lea.vmem %s1, %s375
        %s377 = smul.u32 4, %s23
      $region32: #{_lambda_.1} parent=23 // pred_fallthru
        _
      // Predicated region
      $region33: #{_lambda_.1} parent=23 // pred_check
        %p378 = pneg %p113
      $region34: #{_lambda_.1} parent=23 // pred_check_branch
        %380 = sbr.rel (%p378) target = $region36
      $region35: #{_lambda_.1} parent=23 // pred_region
        %s381 = smul.u32 %s23, 4
        %s382 = ssub.s32 %s381, 1
        %p383 = scmp.gt.s32.totalorder %s382, 0
        %s384 = scalar_select %p383, %s382, 0
        %p385 = scmp.lt.s32.totalorder %s22, 1
        %s386 = scalar_select %p385, %s22, 1
        %p387 = scmp.lt.s32.totalorder %s384, 15
        %s388 = scalar_select %p387, %s384, 15
        %s389 = smul.addr %s388, 2
        %s390 = smul.addr %s386, 32
        %s391 = sadd.s32 %s389, %s390
        %s392 = smul.addr %s391, 4
        %s393 = scalar_lea.vmem %s2, %s392
        %s394 = smul.u32 %s23, 4
        %s395 = ssub.s32 %s394, 1
        %p396 = scmp.gt.s32.totalorder %s395, 0
        %s397 = scalar_select %p396, %s395, 0
      $region36: #{_lambda_.1} parent=23 // pred_fallthru
        _
      // Predicated region
      $region37: #{_lambda_.1} parent=23 // pred_check
        %p398 = pneg %p149
      $region38: #{_lambda_.1} parent=23 // pred_check_branch
        %400 = sbr.rel (%p398) target = $region40
      $region39: #{_lambda_.1} parent=23 // pred_region
        %s401 = smul.u32 %s23, 4
        %s402 = ssub.s32 %s401, 1
        %p403 = scmp.gt.s32.totalorder %s402, 0
        %s404 = scalar_select %p403, %s402, 0
        %p405 = scmp.lt.s32.totalorder %s22, 1
        %s406 = scalar_select %p405, %s22, 1
        %p407 = scmp.lt.s32.totalorder %s404, 15
        %s408 = scalar_select %p407, %s404, 15
        %s409 = smul.addr %s408, 2
        %s410 = smul.addr %s406, 32
        %s411 = sadd.s32 %s409, %s410
        %s412 = smul.addr %s411, 4
        %s413 = scalar_lea.vmem %s3, %s412
        %s414 = smul.u32 %s23, 4
        %s415 = ssub.s32 %s414, 1
        %p416 = scmp.gt.s32.totalorder %s415, 0
        %s417 = scalar_select %p416, %s415, 0
      $region40: #{_lambda_.1} parent=23 // pred_fallthru
        _
      // Predicated region
      $region41: #{_lambda_.1} parent=23 // pred_check
        %p418 = pneg %p185
      $region42: #{_lambda_.1} parent=23 // pred_check_branch
        %420 = sbr.rel (%p418) target = $region44
      $region43: #{_lambda_.1} parent=23 // pred_region
        %s421 = smul.u32 %s23, 4
        %s422 = sadd.s32 %s421, 4
        %p423 = scmp.lt.s32.totalorder %s422, 15
        %s424 = scalar_select %p423, %s422, 15
        %p425 = scmp.lt.s32.totalorder %s22, 1
        %s426 = scalar_select %p425, %s22, 1
        %p427 = scmp.lt.s32.totalorder %s424, 15
        %s428 = scalar_select %p427, %s424, 15
        %s429 = smul.addr %s428, 2
        %s430 = smul.addr %s426, 32
        %s431 = sadd.s32 %s429, %s430
        %s432 = smul.addr %s431, 4
        %s433 = scalar_lea.vmem %s4, %s432
        %s434 = smul.u32 %s23, 4
        %s435 = sadd.s32 %s434, 4
        %p436 = scmp.lt.s32.totalorder %s435, 15
        %s437 = scalar_select %p436, %s435, 15
      $region44: #{_lambda_.1} parent=23 // pred_fallthru
        _
      // Predicated region
      $region45: #{_lambda_.1} parent=23 // pred_check
        %p438 = pneg %p221
      $region46: #{_lambda_.1} parent=23 // pred_check_branch
        %440 = sbr.rel (%p438) target = $region48
      $region47: #{_lambda_.1} parent=23 // pred_region
        %s441 = smul.u32 %s23, 4
        %s442 = sadd.s32 %s441, 4
        %p443 = scmp.lt.s32.totalorder %s442, 15
        %s444 = scalar_select %p443, %s442, 15
        %p445 = scmp.lt.s32.totalorder %s22, 1
        %s446 = scalar_select %p445, %s22, 1
        %p447 = scmp.lt.s32.totalorder %s444, 15
        %s448 = scalar_select %p447, %s444, 15
        %s449 = smul.addr %s448, 2
        %s450 = smul.addr %s446, 32
        %s451 = sadd.s32 %s449, %s450
        %s452 = smul.addr %s451, 4
        %s453 = scalar_lea.vmem %s5, %s452
        %s454 = smul.u32 %s23, 4
        %s455 = sadd.s32 %s454, 4
        %p456 = scmp.lt.s32.totalorder %s455, 15
        %s457 = scalar_select %p456, %s455, 15
      $region48: #{_lambda_.1} parent=23 // pred_fallthru
        _
      // Predicated region
      $region49: #{_lambda_.1} parent=23 // pred_check
        %p458 = pneg %p291
      $region50: #{_lambda_.1} parent=23 // pred_check_branch
        %460 = sbr.rel (%p458) target = $region52
      $region51: #{_lambda_.1} parent=23 // pred_region
        %p461 = scmp.lt.s32.totalorder %s22, 1
        %s462 = scalar_select %p461, %s22, 1
        %p463 = scmp.lt.s32.totalorder %s23, 3
        %s464 = scalar_select %p463, %s23, 3
        %s465 = smul.addr %s464, 8
        %s466 = smul.addr %s462, 32
        %s467 = sadd.s32 %s465, %s466
        %s468 = smul.addr %s467, 4
        %s469 = scalar_lea.vmem %s8, %s468
      $region52: #{_lambda_.1} parent=23 // pred_fallthru
        _
    $region24: #{_lambda_.1} parent=5 // pred_fallthru
      _
    %p470 = scmp.le.s32.totalorder 1, %s15
    %p471 = scmp.lt.s32.totalorder %s15, 9
    %p472 = pnand %p470, %p471
    %p473 = pneg %p472
    // Predicated region
    $region53: #{_lambda_.1} parent=5 // pred_check
      _
    $region54: #{_lambda_.1} parent=5 // pred_check_branch
      %475 = sbr.rel (%p472) target = $region56
    $region55: #{_lambda_.1} parent=5 // pred_region
      %s476 = ssub.s32 %s15, 1
      %s477 = smul.u32 4, %s25
      %p478 = scmp.lt.s32.totalorder %s24, 1
      %s479 = scalar_select %p478, %s24, 1
      %p480 = scmp.lt.s32.totalorder %s477, 15
      %s481 = scalar_select %p480, %s477, 15
      %s482 = smul.addr %s481, 2
      %s483 = smul.addr %s479, 32
      %s484 = sadd.s32 %s482, %s483
      %s485 = smul.addr %s484, 4
      %s486 = scalar_lea.vmem %s0, %s485
      %p487 = pneg %p55
      %p488 = pneg %p52
      %s489 = smul.u32 4, %s25
      %p490 = scmp.lt.s32.totalorder %s24, 1
      %s491 = scalar_select %p490, %s24, 1
      %p492 = scmp.lt.s32.totalorder %s489, 15
      %s493 = scalar_select %p492, %s489, 15
      %s494 = smul.addr %s493, 2
      %s495 = smul.addr %s491, 32
      %s496 = sadd.s32 %s494, %s495
      %s497 = smul.addr %s496, 4
      %s498 = scalar_lea.vmem %s1, %s497
      %p499 = pneg %p83
      %p500 = pneg %p80
      %s501 = smul.u32 %s25, 4
      %s502 = ssub.s32 %s501, 1
      %p503 = scmp.gt.s32.totalorder %s502, 0
      %s504 = scalar_select %p503, %s502, 0
      %p505 = scmp.lt.s32.totalorder %s24, 1
      %s506 = scalar_select %p505, %s24, 1
      %p507 = scmp.lt.s32.totalorder %s504, 15
      %s508 = scalar_select %p507, %s504, 15
      %s509 = smul.addr %s508, 2
      %s510 = smul.addr %s506, 32
      %s511 = sadd.s32 %s509, %s510
      %s512 = smul.addr %s511, 4
      %s513 = scalar_lea.vmem %s2, %s512
      %p514 = pneg %p119
      %p515 = pneg %p116
      %s516 = smul.u32 %s25, 4
      %s517 = ssub.s32 %s516, 1
      %p518 = scmp.gt.s32.totalorder %s517, 0
      %s519 = scalar_select %p518, %s517, 0
      %p520 = scmp.lt.s32.totalorder %s24, 1
      %s521 = scalar_select %p520, %s24, 1
      %p522 = scmp.lt.s32.totalorder %s519, 15
      %s523 = scalar_select %p522, %s519, 15
      %s524 = smul.addr %s523, 2
      %s525 = smul.addr %s521, 32
      %s526 = sadd.s32 %s524, %s525
      %s527 = smul.addr %s526, 4
      %s528 = scalar_lea.vmem %s3, %s527
      %p529 = pneg %p155
      %p530 = pneg %p152
      %s531 = smul.u32 %s25, 4
      %s532 = sadd.s32 %s531, 4
      %p533 = scmp.lt.s32.totalorder %s532, 15
      %s534 = scalar_select %p533, %s532, 15
      %p535 = scmp.lt.s32.totalorder %s24, 1
      %s536 = scalar_select %p535, %s24, 1
      %p537 = scmp.lt.s32.totalorder %s534, 15
      %s538 = scalar_select %p537, %s534, 15
      %s539 = smul.addr %s538, 2
      %s540 = smul.addr %s536, 32
      %s541 = sadd.s32 %s539, %s540
      %s542 = smul.addr %s541, 4
      %s543 = scalar_lea.vmem %s4, %s542
      %p544 = pneg %p191
      %p545 = pneg %p188
      %s546 = smul.u32 %s25, 4
      %s547 = sadd.s32 %s546, 4
      %p548 = scmp.lt.s32.totalorder %s547, 15
      %s549 = scalar_select %p548, %s547, 15
      %p550 = scmp.lt.s32.totalorder %s24, 1
      %s551 = scalar_select %p550, %s24, 1
      %p552 = scmp.lt.s32.totalorder %s549, 15
      %s553 = scalar_select %p552, %s549, 15
      %s554 = smul.addr %s553, 2
      %s555 = smul.addr %s551, 32
      %s556 = sadd.s32 %s554, %s555
      %s557 = smul.addr %s556, 4
      %s558 = scalar_lea.vmem %s5, %s557
      %p559 = pneg %p227
      %p560 = pneg %p224
      %p561 = pneg %p248
      %p562 = pneg %p245
      %p563 = pneg %p269
      %p564 = pneg %p266
      %p565 = scmp.lt.s32.totalorder %s24, 1
      %s566 = scalar_select %p565, %s24, 1
      %p567 = scmp.lt.s32.totalorder %s25, 3
      %s568 = scalar_select %p567, %s25, 3
      %s569 = smul.addr %s568, 8
      %s570 = smul.addr %s566, 32
      %s571 = sadd.s32 %s569, %s570
      %s572 = smul.addr %s571, 4
      %s573 = scalar_lea.vmem %s8, %s572
      %p574 = pneg %p297
      %p575 = pneg %p294
      %p576 = pneg %p325
      %p577 = pneg %p322
      %p578 = scmp.lt.s32.totalorder %s24, 1
      %s579 = scalar_select %p578, %s24, 1
      %p580 = scmp.lt.s32.totalorder %s25, 3
      %s581 = scalar_select %p580, %s25, 3
      %s582 = smul.addr %s581, 8
      %s583 = smul.addr %s579, 32
      %s584 = sadd.s32 %s582, %s583
      %s585 = smul.addr %s584, 4
      %s586 = scalar_lea.vmem %s9, %s585
      %s587 = smul.u32 4, %s25
      %p588 = scmp.lt.s32.totalorder %s24, 1
      %s589 = scalar_select %p588, %s24, 1
      %p590 = scmp.lt.s32.totalorder %s587, 15
      %s591 = scalar_select %p590, %s587, 15
      %s592 = smul.addr %s591, 2
      %s593 = smul.addr %s589, 32
      %s594 = sadd.s32 %s592, %s593
      %s595 = smul.addr %s594, 4
      %s596 = scalar_lea.vmem %s0, %s595
      %s597 = smul.u32 4, %s25
      %s598 = smul.u32 4, %s25
      %p599 = scmp.lt.s32.totalorder %s24, 1
      %s600 = scalar_select %p599, %s24, 1
      %p601 = scmp.lt.s32.totalorder %s598, 15
      %s602 = scalar_select %p601, %s598, 15
      %s603 = smul.addr %s602, 2
      %s604 = smul.addr %s600, 32
      %s605 = sadd.s32 %s603, %s604
      %s606 = smul.addr %s605, 4
      %s607 = scalar_lea.vmem %s1, %s606
      %s608 = smul.u32 4, %s25
      %s609 = smul.u32 %s25, 4
      %s610 = ssub.s32 %s609, 1
      %p611 = scmp.gt.s32.totalorder %s610, 0
      %s612 = scalar_select %p611, %s610, 0
      %p613 = scmp.lt.s32.totalorder %s24, 1
      %s614 = scalar_select %p613, %s24, 1
      %p615 = scmp.lt.s32.totalorder %s612, 15
      %s616 = scalar_select %p615, %s612, 15
      %s617 = smul.addr %s616, 2
      %s618 = smul.addr %s614, 32
      %s619 = sadd.s32 %s617, %s618
      %s620 = smul.addr %s619, 4
      %s621 = scalar_lea.vmem %s2, %s620
      %s622 = smul.u32 %s25, 4
      %s623 = ssub.s32 %s622, 1
      %p624 = scmp.gt.s32.totalorder %s623, 0
      %s625 = scalar_select %p624, %s623, 0
      %s626 = smul.u32 %s25, 4
      %s627 = ssub.s32 %s626, 1
      %p628 = scmp.gt.s32.totalorder %s627, 0
      %s629 = scalar_select %p628, %s627, 0
      %p630 = scmp.lt.s32.totalorder %s24, 1
      %s631 = scalar_select %p630, %s24, 1
      %p632 = scmp.lt.s32.totalorder %s629, 15
      %s633 = scalar_select %p632, %s629, 15
      %s634 = smul.addr %s633, 2
      %s635 = smul.addr %s631, 32
      %s636 = sadd.s32 %s634, %s635
      %s637 = smul.addr %s636, 4
      %s638 = scalar_lea.vmem %s3, %s637
      %s639 = smul.u32 %s25, 4
      %s640 = ssub.s32 %s639, 1
      %p641 = scmp.gt.s32.totalorder %s640, 0
      %s642 = scalar_select %p641, %s640, 0
      %s643 = smul.u32 %s25, 4
      %s644 = sadd.s32 %s643, 4
      %p645 = scmp.lt.s32.totalorder %s644, 15
      %s646 = scalar_select %p645, %s644, 15
      %p647 = scmp.lt.s32.totalorder %s24, 1
      %s648 = scalar_select %p647, %s24, 1
      %p649 = scmp.lt.s32.totalorder %s646, 15
      %s650 = scalar_select %p649, %s646, 15
      %s651 = smul.addr %s650, 2
      %s652 = smul.addr %s648, 32
      %s653 = sadd.s32 %s651, %s652
      %s654 = smul.addr %s653, 4
      %s655 = scalar_lea.vmem %s4, %s654
      %s656 = smul.u32 %s25, 4
      %s657 = sadd.s32 %s656, 4
      %p658 = scmp.lt.s32.totalorder %s657, 15
      %s659 = scalar_select %p658, %s657, 15
      %s660 = smul.u32 %s25, 4
      %s661 = sadd.s32 %s660, 4
      %p662 = scmp.lt.s32.totalorder %s661, 15
      %s663 = scalar_select %p662, %s661, 15
      %p664 = scmp.lt.s32.totalorder %s24, 1
      %s665 = scalar_select %p664, %s24, 1
      %p666 = scmp.lt.s32.totalorder %s663, 15
      %s667 = scalar_select %p666, %s663, 15
      %s668 = smul.addr %s667, 2
      %s669 = smul.addr %s665, 32
      %s670 = sadd.s32 %s668, %s669
      %s671 = smul.addr %s670, 4
      %s672 = scalar_lea.vmem %s5, %s671
      %s673 = smul.u32 %s25, 4
      %s674 = sadd.s32 %s673, 4
      %p675 = scmp.lt.s32.totalorder %s674, 15
      %s676 = scalar_select %p675, %s674, 15
      %p677 = scmp.lt.s32.totalorder %s24, 1
      %s678 = scalar_select %p677, %s24, 1
      %p679 = scmp.lt.s32.totalorder %s25, 3
      %s680 = scalar_select %p679, %s25, 3
      %s681 = smul.addr %s680, 8
      %s682 = smul.addr %s678, 32
      %s683 = sadd.s32 %s681, %s682
      %s684 = smul.addr %s683, 4
      %s685 = scalar_lea.vmem %s8, %s684
      %p686 = scmp.lt.s32.totalorder %s24, 1
      %s687 = scalar_select %p686, %s24, 1
      %p688 = scmp.lt.s32.totalorder %s25, 3
      %s689 = scalar_select %p688, %s25, 3
      %s690 = smul.addr %s689, 8
      %s691 = smul.addr %s687, 32
      %s692 = sadd.s32 %s690, %s691
      %s693 = smul.addr %s692, 4
      %s694 = scalar_lea.vmem %s9, %s693
      %p696 = scmp.eq.s32.totalorder %s25, 0
      %s697 = scalar_select %p696, 0.0, 1.0
      %p699 = scmp.ne.f32.partialorder %s697, %s697
      %s700 = sshrl.u32 %s697, 16
      %s701 = sand.u32 %s700, 1
      %s702 = sadd.s32 32767, %s701
      %s703 = sadd.s32 %s697, %s702
      %s704 = sand.u32 %s703, 4294901760
      %s705 = scalar_select %p699, 2143289344, %s704
      %s707 = sshrl.u32 %s705, 16
      %p708 = scmp.eq.s32.totalorder %s25, 3
      %s709 = scalar_select %p708, 0.0, 1.0
      %p711 = scmp.ne.f32.partialorder %s709, %s709
      %s712 = sshrl.u32 %s709, 16
      %s713 = sand.u32 %s712, 1
      %s714 = sadd.s32 32767, %s713
      %s715 = sadd.s32 %s709, %s714
      %s716 = sand.u32 %s715, 4294901760
      %s717 = scalar_select %p711, 2143289344, %s716
      %s719 = sshrl.u32 %s717, 16
      %v720 = vld [vmem:[%s596] sm:$0xf]
      %v721 = vld [vmem:[%s596 + $0x4] sm:$0xf]
      %v722 = vld [vmem:[%s596 + $0x8] sm:$0xf]
      %v723 = vld [vmem:[%s596 + $0xc] sm:$0xf]
      %v724 = vld [vmem:[%s596 + $0x10] sm:$0xf]
      %v725 = vld [vmem:[%s596 + $0x14] sm:$0xf]
      %v726 = vld [vmem:[%s596 + $0x18] sm:$0xf]
      %v727 = vld [vmem:[%s596 + $0x1c] sm:$0xf]
      %v728 = vld [vmem:[%s621] sm:$0xf]
      %v729 = vld [vmem:[%s621 + $0x4] sm:$0xf]
      %s730 = sshll.u32 %s707, 16
      %s731 = sor.u32 %s707, %s730
      %v732 = vstv %s731
      %v734 = vunpack.c.l.bf16 %v728
      %v735 = vunpack.c.l.bf16 %v729
      %v736 = vunpack.c.l.bf16 %v732
      %v737 = vmul.f32 %v734, %v736
      %v738 = vmul.f32 %v735, %v736
      %v739 = vpack.c.bf16 %v737, %v737
      %v740 = vpack.c.bf16 %v738, %v738
      %v741 = vld [vmem:[%s655] sm:$0xf]
      %v742 = vld [vmem:[%s655 + $0x4] sm:$0xf]
      %s743 = sshll.u32 %s719, 16
      %s744 = sor.u32 %s719, %s743
      %v745 = vstv %s744
      %v747 = vunpack.c.l.bf16 %v741
      %v748 = vunpack.c.l.bf16 %v742
      %v749 = vunpack.c.l.bf16 %v745
      %v750 = vmul.f32 %v747, %v749
      %v751 = vmul.f32 %v748, %v749
      %v752 = vpack.c.bf16 %v750, %v750
      %v753 = vpack.c.bf16 %v751, %v751
      %v766 = vunpack.c.l.b16 %v739
      %v767 = vunpack.c.l.b16 %v740
      %v768 = vunpack.c.l.b16 %v720
      %v769 = vunpack.c.l.b16 %v721
      %v770 = vunpack.c.l.b16 %v722
      %v771 = vunpack.c.l.b16 %v723
      %v772 = vunpack.c.l.b16 %v724
      %v773 = vunpack.c.l.b16 %v725
      %v774 = vunpack.c.l.b16 %v726
      %v775 = vunpack.c.l.b16 %v727
      %v776 = vunpack.c.l.b16 %v752
      %v777 = vunpack.c.l.b16 %v753
      %v778 = vpack.c.b16 %v767, %v766
      %v779 = vpack.c.b16 %v769, %v768
      %v780 = vpack.c.b16 %v771, %v770
      %v781 = vpack.c.b16 %v773, %v772
      %v782 = vpack.c.b16 %v775, %v774
      %v783 = vpack.c.b16 %v777, %v776
      %v785 = vshrl.u32 %v778, 16
      %v787 = vrot.slane %v785, 7
      %v788 = vshll.u32 %v778, 16
      %v790 = vor.u32 %v787, %v788
      %v792 = vshrl.u32 %v779, 16
      %v794 = vrot.slane %v792, 7
      %v795 = vshll.u32 %v779, 16
      %v797 = vor.u32 %v794, %v795
      %v799 = vshrl.u32 %v780, 16
      %v801 = vrot.slane %v799, 7
      %v802 = vshll.u32 %v780, 16
      %v804 = vor.u32 %v801, %v802
      %v806 = vshrl.u32 %v781, 16
      %v808 = vrot.slane %v806, 7
      %v809 = vshll.u32 %v781, 16
      %v811 = vor.u32 %v808, %v809
      %v813 = vshrl.u32 %v782, 16
      %v815 = vrot.slane %v813, 7
      %v816 = vshll.u32 %v782, 16
      %v818 = vor.u32 %v815, %v816
      %v820 = vshrl.u32 %v783, 16
      %v822 = vrot.slane %v820, 7
      %v823 = vshll.u32 %v783, 16
      %v825 = vor.u32 %v822, %v823
      %vm838 = vcmask 1040384
      %vm839 = vsmask.f32 256
      %vm840 = vmand %vm838, %vm839
      %v841 = vsel %vm840, 0, %v790
      %v842 = vsel %vm840, 0, %v797
      %v843 = vsel %vm840, 0, %v804
      %v844 = vsel %vm840, 0, %v811
      %v845 = vsel %vm840, 0, %v818
      %v846 = vsel %vm840, 0, %v825
      %v847 = vsel %vm840, %v787, 0
      %v848 = vsel %vm840, %v794, 0
      %v849 = vsel %vm840, %v801, 0
      %v850 = vsel %vm840, %v808, 0
      %v851 = vsel %vm840, %v815, 0
      %v852 = vsel %vm840, %v822, 0
      %v853 = vld [vmem:[%s607] sm:$0xf]
      %v854 = vld [vmem:[%s607 + $0x4] sm:$0xf]
      %v855 = vld [vmem:[%s607 + $0x8] sm:$0xf]
      %v856 = vld [vmem:[%s607 + $0xc] sm:$0xf]
      %v857 = vld [vmem:[%s607 + $0x10] sm:$0xf]
      %v858 = vld [vmem:[%s607 + $0x14] sm:$0xf]
      %v859 = vld [vmem:[%s607 + $0x18] sm:$0xf]
      %v860 = vld [vmem:[%s607 + $0x1c] sm:$0xf]
      %v861 = vld [vmem:[%s638] sm:$0xf]
      %v862 = vld [vmem:[%s638 + $0x4] sm:$0xf]
      %v863 = vunpack.c.l.bf16 %v861
      %v864 = vunpack.c.l.bf16 %v862
      %v865 = vmul.f32 %v863, %v736
      %v866 = vmul.f32 %v864, %v736
      %v867 = vpack.c.bf16 %v865, %v865
      %v868 = vpack.c.bf16 %v866, %v866
      %v869 = vld [vmem:[%s672] sm:$0xf]
      %v870 = vld [vmem:[%s672 + $0x4] sm:$0xf]
      %v871 = vunpack.c.l.bf16 %v869
      %v872 = vunpack.c.l.bf16 %v870
      %v873 = vmul.f32 %v871, %v749
      %v874 = vmul.f32 %v872, %v749
      %v875 = vpack.c.bf16 %v873, %v873
      %v876 = vpack.c.bf16 %v874, %v874
      %v889 = vunpack.c.l.b16 %v867
      %v890 = vunpack.c.l.b16 %v868
      %v891 = vunpack.c.l.b16 %v853
      %v892 = vunpack.c.l.b16 %v854
      %v893 = vunpack.c.l.b16 %v855
      %v894 = vunpack.c.l.b16 %v856
      %v895 = vunpack.c.l.b16 %v857
      %v896 = vunpack.c.l.b16 %v858
      %v897 = vunpack.c.l.b16 %v859
      %v898 = vunpack.c.l.b16 %v860
      %v899 = vunpack.c.l.b16 %v875
      %v900 = vunpack.c.l.b16 %v876
      %v901 = vpack.c.b16 %v890, %v889
      %v902 = vpack.c.b16 %v892, %v891
      %v903 = vpack.c.b16 %v894, %v893
      %v904 = vpack.c.b16 %v896, %v895
      %v905 = vpack.c.b16 %v898, %v897
      %v906 = vpack.c.b16 %v900, %v899
      %v908 = vshrl.u32 %v901, 16
      %v910 = vrot.slane %v908, 7
      %v911 = vshll.u32 %v901, 16
      %v913 = vor.u32 %v910, %v911
      %v915 = vshrl.u32 %v902, 16
      %v917 = vrot.slane %v915, 7
      %v918 = vshll.u32 %v902, 16
      %v920 = vor.u32 %v917, %v918
      %v922 = vshrl.u32 %v903, 16
      %v924 = vrot.slane %v922, 7
      %v925 = vshll.u32 %v903, 16
      %v927 = vor.u32 %v924, %v925
      %v929 = vshrl.u32 %v904, 16
      %v931 = vrot.slane %v929, 7
      %v932 = vshll.u32 %v904, 16
      %v934 = vor.u32 %v931, %v932
      %v936 = vshrl.u32 %v905, 16
      %v938 = vrot.slane %v936, 7
      %v939 = vshll.u32 %v905, 16
      %v941 = vor.u32 %v938, %v939
      %v943 = vshrl.u32 %v906, 16
      %v945 = vrot.slane %v943, 7
      %v946 = vshll.u32 %v906, 16
      %v948 = vor.u32 %v945, %v946
      %v961 = vsel %vm840, 0, %v913
      %v962 = vsel %vm840, 0, %v920
      %v963 = vsel %vm840, 0, %v927
      %v964 = vsel %vm840, 0, %v934
      %v965 = vsel %vm840, 0, %v941
      %v966 = vsel %vm840, 0, %v948
      %v967 = vsel %vm840, %v910, 0
      %v968 = vsel %vm840, %v917, 0
      %v969 = vsel %vm840, %v924, 0
      %v970 = vsel %vm840, %v931, 0
      %v971 = vsel %vm840, %v938, 0
      %v972 = vsel %vm840, %v945, 0
      %vm973 = vsmask.f32 7424
      %v975 = vshrl.u32 %v841, 16
      %v977 = vshll.u32 %v841, 16
      %v979 = vrot.slane %v977, 1
      %v980 = vor.u32 %v975, %v979
      %v982 = vshll.u32 %v847, 16
      %v984 = vrot.slane %v982, 1
      %v985 = vsel %vm973, %v980, %v984
      %v987 = vshrl.u32 %v842, 16
      %v989 = vshll.u32 %v842, 16
      %v991 = vrot.slane %v989, 1
      %v992 = vor.u32 %v987, %v991
      %v994 = vshll.u32 %v848, 16
      %v996 = vrot.slane %v994, 1
      %v997 = vsel %vm973, %v992, %v996
      %v999 = vshrl.u32 %v843, 16
      %v1001 = vshll.u32 %v843, 16
      %v1003 = vrot.slane %v1001, 1
      %v1004 = vor.u32 %v999, %v1003
      %v1006 = vshll.u32 %v849, 16
      %v1008 = vrot.slane %v1006, 1
      %v1009 = vsel %vm973, %v1004, %v1008
      %v1011 = vshrl.u32 %v844, 16
      %v1013 = vshll.u32 %v844, 16
      %v1015 = vrot.slane %v1013, 1
      %v1016 = vor.u32 %v1011, %v1015
      %v1018 = vshll.u32 %v850, 16
      %v1020 = vrot.slane %v1018, 1
      %v1021 = vsel %vm973, %v1016, %v1020
      %v1023 = vshrl.u32 %v961, 16
      %v1025 = vshll.u32 %v961, 16
      %v1027 = vrot.slane %v1025, 1
      %v1028 = vor.u32 %v1023, %v1027
      %v1030 = vshll.u32 %v967, 16
      %v1032 = vrot.slane %v1030, 1
      %v1033 = vsel %vm973, %v1028, %v1032
      %v1035 = vshrl.u32 %v962, 16
      %v1037 = vshll.u32 %v962, 16
      %v1039 = vrot.slane %v1037, 1
      %v1040 = vor.u32 %v1035, %v1039
      %v1042 = vshll.u32 %v968, 16
      %v1044 = vrot.slane %v1042, 1
      %v1045 = vsel %vm973, %v1040, %v1044
      %v1047 = vshrl.u32 %v963, 16
      %v1049 = vshll.u32 %v963, 16
      %v1051 = vrot.slane %v1049, 1
      %v1052 = vor.u32 %v1047, %v1051
      %v1054 = vshll.u32 %v969, 16
      %v1056 = vrot.slane %v1054, 1
      %v1057 = vsel %vm973, %v1052, %v1056
      %v1059 = vshrl.u32 %v964, 16
      %v1061 = vshll.u32 %v964, 16
      %v1063 = vrot.slane %v1061, 1
      %v1064 = vor.u32 %v1059, %v1063
      %v1066 = vshll.u32 %v970, 16
      %v1068 = vrot.slane %v1066, 1
      %v1069 = vsel %vm973, %v1064, %v1068
      %vm1078 = vcmask 1046528
      %v1079 = vrot.slane %v841, 1
      %v1080 = vrot.slane %v847, 1
      %v1081 = vsel %vm1078, %v1079, %v1080
      %v1082 = vrot.slane %v842, 1
      %v1083 = vrot.slane %v848, 1
      %v1084 = vsel %vm1078, %v1082, %v1083
      %v1085 = vrot.slane %v843, 1
      %v1086 = vrot.slane %v849, 1
      %v1087 = vsel %vm1078, %v1085, %v1086
      %v1088 = vrot.slane %v844, 1
      %v1089 = vrot.slane %v850, 1
      %v1090 = vsel %vm1078, %v1088, %v1089
      %v1099 = vrot.slane %v961, 1
      %v1100 = vrot.slane %v967, 1
      %v1101 = vsel %vm1078, %v1099, %v1100
      %v1102 = vrot.slane %v962, 1
      %v1103 = vrot.slane %v968, 1
      %v1104 = vsel %vm1078, %v1102, %v1103
      %v1105 = vrot.slane %v963, 1
      %v1106 = vrot.slane %v969, 1
      %v1107 = vsel %vm1078, %v1105, %v1106
      %v1108 = vrot.slane %v964, 1
      %v1109 = vrot.slane %v970, 1
      %v1110 = vsel %vm1078, %v1108, %v1109
      %v1112 = vshrl.u32 %v845, 16
      %v1114 = vshll.u32 %v845, 16
      %v1116 = vrot.slane %v1114, 1
      %v1117 = vor.u32 %v1112, %v1116
      %v1119 = vshll.u32 %v851, 16
      %v1121 = vrot.slane %v1119, 1
      %v1122 = vsel %vm973, %v1117, %v1121
      %v1124 = vshrl.u32 %v965, 16
      %v1126 = vshll.u32 %v965, 16
      %v1128 = vrot.slane %v1126, 1
      %v1129 = vor.u32 %v1124, %v1128
      %v1131 = vshll.u32 %v971, 16
      %v1133 = vrot.slane %v1131, 1
      %v1134 = vsel %vm973, %v1129, %v1133
      %v1137 = vrot.slane %v845, 1
      %v1138 = vrot.slane %v851, 1
      %v1139 = vsel %vm1078, %v1137, %v1138
      %v1142 = vrot.slane %v965, 1
      %v1143 = vrot.slane %v971, 1
      %v1144 = vsel %vm1078, %v1142, %v1143
      %v1146 = vshrl.u32 %v846, 16
      %v1148 = vshll.u32 %v846, 16
      %v1150 = vrot.slane %v1148, 1
      %v1151 = vor.u32 %v1146, %v1150
      %v1153 = vshll.u32 %v852, 16
      %v1155 = vrot.slane %v1153, 1
      %v1156 = vsel %vm973, %v1151, %v1155
      %v1158 = vshrl.u32 %v966, 16
      %v1160 = vshll.u32 %v966, 16
      %v1162 = vrot.slane %v1160, 1
      %v1163 = vor.u32 %v1158, %v1162
      %v1165 = vshll.u32 %v972, 16
      %v1167 = vrot.slane %v1165, 1
      %v1168 = vsel %vm973, %v1163, %v1167
      %v1171 = vrot.slane %v846, 1
      %v1172 = vrot.slane %v852, 1
      %v1173 = vsel %vm1078, %v1171, %v1172
      %v1176 = vrot.slane %v966, 1
      %v1177 = vrot.slane %v972, 1
      %v1178 = vsel %vm1078, %v1176, %v1177
      %1179 = vrot.lane.b32.xlu0 %v961, 8
      %v1180 = vpop.permute.xlu0 %1179
      %1181 = vrot.lane.b32.xlu0 %v962, 8
      %v1182 = vpop.permute.xlu0 %1181
      %1183 = vrot.lane.b32.xlu0 %v963, 8
      %v1184 = vpop.permute.xlu0 %1183
      %1185 = vrot.lane.b32.xlu0 %v964, 8
      %v1186 = vpop.permute.xlu0 %1185
      %1187 = vrot.lane.b32.xlu0 %v985, 16
      %v1188 = vpop.permute.xlu0 %1187
      %1189 = vrot.lane.b32.xlu0 %v997, 16
      %v1190 = vpop.permute.xlu0 %1189
      %1191 = vrot.lane.b32.xlu0 %v1009, 16
      %v1192 = vpop.permute.xlu0 %1191
      %1193 = vrot.lane.b32.xlu0 %v1021, 16
      %v1194 = vpop.permute.xlu0 %1193
      %1195 = vrot.lane.b32.xlu0 %v1033, 24
      %v1196 = vpop.permute.xlu0 %1195
      %1197 = vrot.lane.b32.xlu0 %v1045, 24
      %v1198 = vpop.permute.xlu0 %1197
      %1199 = vrot.lane.b32.xlu0 %v1057, 24
      %v1200 = vpop.permute.xlu0 %1199
      %1201 = vrot.lane.b32.xlu0 %v1069, 24
      %v1202 = vpop.permute.xlu0 %1201
      %1203 = vrot.lane.b32.xlu0 %v1081, 32
      %v1204 = vpop.permute.xlu0 %1203
      %1205 = vrot.lane.b32.xlu0 %v1084, 32
      %v1206 = vpop.permute.xlu0 %1205
      %1207 = vrot.lane.b32.xlu0 %v1087, 32
      %v1208 = vpop.permute.xlu0 %1207
      %1209 = vrot.lane.b32.xlu0 %v1090, 32
      %v1210 = vpop.permute.xlu0 %1209
      %1211 = vrot.lane.b32.xlu0 %v1101, 40
      %v1212 = vpop.permute.xlu0 %1211
      %1213 = vrot.lane.b32.xlu0 %v1104, 40
      %v1214 = vpop.permute.xlu0 %1213
      %1215 = vrot.lane.b32.xlu0 %v1107, 40
      %v1216 = vpop.permute.xlu0 %1215
      %1217 = vrot.lane.b32.xlu0 %v1110, 40
      %v1218 = vpop.permute.xlu0 %1217
      %1219 = vrot.lane.b32.xlu0 %v842, 48
      %v1220 = vpop.permute.xlu0 %1219
      %1221 = vrot.lane.b32.xlu0 %v843, 48
      %v1222 = vpop.permute.xlu0 %1221
      %1223 = vrot.lane.b32.xlu0 %v844, 48
      %v1224 = vpop.permute.xlu0 %1223
      %1225 = vrot.lane.b32.xlu0 %v845, 48
      %v1226 = vpop.permute.xlu0 %1225
      %1227 = vrot.lane.b32.xlu0 %v962, 56
      %v1228 = vpop.permute.xlu0 %1227
      %1229 = vrot.lane.b32.xlu0 %v963, 56
      %v1230 = vpop.permute.xlu0 %1229
      %1231 = vrot.lane.b32.xlu0 %v964, 56
      %v1232 = vpop.permute.xlu0 %1231
      %1233 = vrot.lane.b32.xlu0 %v965, 56
      %v1234 = vpop.permute.xlu0 %1233
      %1235 = vrot.lane.b32.xlu0 %v997, 64
      %v1236 = vpop.permute.xlu0 %1235
      %1237 = vrot.lane.b32.xlu0 %v1009, 64
      %v1238 = vpop.permute.xlu0 %1237
      %1239 = vrot.lane.b32.xlu0 %v1021, 64
      %v1240 = vpop.permute.xlu0 %1239
      %1241 = vrot.lane.b32.xlu0 %v1122, 64
      %v1242 = vpop.permute.xlu0 %1241
      %1243 = vrot.lane.b32.xlu0 %v1045, 72
      %v1244 = vpop.permute.xlu0 %1243
      %1245 = vrot.lane.b32.xlu0 %v1057, 72
      %v1246 = vpop.permute.xlu0 %1245
      %1247 = vrot.lane.b32.xlu0 %v1069, 72
      %v1248 = vpop.permute.xlu0 %1247
      %1249 = vrot.lane.b32.xlu0 %v1134, 72
      %v1250 = vpop.permute.xlu0 %1249
      %1251 = vrot.lane.b32.xlu0 %v1084, 80
      %v1252 = vpop.permute.xlu0 %1251
      %1253 = vrot.lane.b32.xlu0 %v1087, 80
      %v1254 = vpop.permute.xlu0 %1253
      %1255 = vrot.lane.b32.xlu0 %v1090, 80
      %v1256 = vpop.permute.xlu0 %1255
      %1257 = vrot.lane.b32.xlu0 %v1139, 80
      %v1258 = vpop.permute.xlu0 %1257
      %1259 = vrot.lane.b32.xlu0 %v1104, 88
      %v1260 = vpop.permute.xlu0 %1259
      %1261 = vrot.lane.b32.xlu0 %v1107, 88
      %v1262 = vpop.permute.xlu0 %1261
      %1263 = vrot.lane.b32.xlu0 %v1110, 88
      %v1264 = vpop.permute.xlu0 %1263
      %1265 = vrot.lane.b32.xlu0 %v1144, 88
      %v1266 = vpop.permute.xlu0 %1265
      %1267 = vrot.lane.b32.xlu0 %v843, 96
      %v1268 = vpop.permute.xlu0 %1267
      %1269 = vrot.lane.b32.xlu0 %v844, 96
      %v1270 = vpop.permute.xlu0 %1269
      %1271 = vrot.lane.b32.xlu0 %v845, 96
      %v1272 = vpop.permute.xlu0 %1271
      %1273 = vrot.lane.b32.xlu0 %v846, 96
      %v1274 = vpop.permute.xlu0 %1273
      %1275 = vrot.lane.b32.xlu0 %v963, 104
      %v1276 = vpop.permute.xlu0 %1275
      %1277 = vrot.lane.b32.xlu0 %v964, 104
      %v1278 = vpop.permute.xlu0 %1277
      %1279 = vrot.lane.b32.xlu0 %v965, 104
      %v1280 = vpop.permute.xlu0 %1279
      %1281 = vrot.lane.b32.xlu0 %v966, 104
      %v1282 = vpop.permute.xlu0 %1281
      %1283 = vrot.lane.b32.xlu0 %v1009, 112
      %v1284 = vpop.permute.xlu0 %1283
      %1285 = vrot.lane.b32.xlu0 %v1021, 112
      %v1286 = vpop.permute.xlu0 %1285
      %1287 = vrot.lane.b32.xlu0 %v1122, 112
      %v1288 = vpop.permute.xlu0 %1287
      %1289 = vrot.lane.b32.xlu0 %v1156, 112
      %v1290 = vpop.permute.xlu0 %1289
      %1291 = vrot.lane.b32.xlu0 %v1057, 120
      %v1292 = vpop.permute.xlu0 %1291
      %1293 = vrot.lane.b32.xlu0 %v1069, 120
      %v1294 = vpop.permute.xlu0 %1293
      %1295 = vrot.lane.b32.xlu0 %v1134, 120
      %v1296 = vpop.permute.xlu0 %1295
      %1297 = vrot.lane.b32.xlu0 %v1168, 120
      %v1298 = vpop.permute.xlu0 %1297
      %vm1299 = vcmask 64512
      %v1301 = vsel %vm1299, %v841, %v1180
      %v1303 = vsel %vm1299, %v842, %v1182
      %v1305 = vsel %vm1299, %v843, %v1184
      %v1307 = vsel %vm1299, %v844, %v1186
      %vm1308 = vcmask 130048
      %v1310 = vsel %vm1308, %v1301, %v1188
      %v1312 = vsel %vm1308, %v1303, %v1190
      %v1314 = vsel %vm1308, %v1305, %v1192
      %v1316 = vsel %vm1308, %v1307, %v1194
      %vm1317 = vcmask 195584
      %v1319 = vsel %vm1317, %v1310, %v1196
      %v1321 = vsel %vm1317, %v1312, %v1198
      %v1323 = vsel %vm1317, %v1314, %v1200
      %v1325 = vsel %vm1317, %v1316, %v1202
      %vm1326 = vcmask 261120
      %v1328 = vsel %vm1326, %v1319, %v1204
      %v1330 = vsel %vm1326, %v1321, %v1206
      %v1332 = vsel %vm1326, %v1323, %v1208
      %v1334 = vsel %vm1326, %v1325, %v1210
      %vm1335 = vcmask 326656
      %v1337 = vsel %vm1335, %v1328, %v1212
      %v1339 = vsel %vm1335, %v1330, %v1214
      %v1341 = vsel %vm1335, %v1332, %v1216
      %v1343 = vsel %vm1335, %v1334, %v1218
      %vm1344 = vcmask 392192
      %v1346 = vsel %vm1344, %v1337, %v1220
      %v1348 = vsel %vm1344, %v1339, %v1222
      %v1350 = vsel %vm1344, %v1341, %v1224
      %v1352 = vsel %vm1344, %v1343, %v1226
      %vm1353 = vcmask 457728
      %v1355 = vsel %vm1353, %v1346, %v1228
      %v1357 = vsel %vm1353, %v1348, %v1230
      %v1359 = vsel %vm1353, %v1350, %v1232
      %v1361 = vsel %vm1353, %v1352, %v1234
      %vm1362 = vcmask 523264
      %v1364 = vsel %vm1362, %v1355, %v1236
      %v1366 = vsel %vm1362, %v1357, %v1238
      %v1368 = vsel %vm1362, %v1359, %v1240
      %v1370 = vsel %vm1362, %v1361, %v1242
      %vm1371 = vcmask 588800
      %v1373 = vsel %vm1371, %v1364, %v1244
      %v1375 = vsel %vm1371, %v1366, %v1246
      %v1377 = vsel %vm1371, %v1368, %v1248
      %v1379 = vsel %vm1371, %v1370, %v1250
      %vm1380 = vcmask 654336
      %v1382 = vsel %vm1380, %v1373, %v1252
      %v1384 = vsel %vm1380, %v1375, %v1254
      %v1386 = vsel %vm1380, %v1377, %v1256
      %v1388 = vsel %vm1380, %v1379, %v1258
      %vm1389 = vcmask 719872
      %v1391 = vsel %vm1389, %v1382, %v1260
      %v1393 = vsel %vm1389, %v1384, %v1262
      %v1395 = vsel %vm1389, %v1386, %v1264
      %v1397 = vsel %vm1389, %v1388, %v1266
      %vm1398 = vcmask 785408
      %v1400 = vsel %vm1398, %v1391, %v1268
      %v1402 = vsel %vm1398, %v1393, %v1270
      %v1404 = vsel %vm1398, %v1395, %v1272
      %v1406 = vsel %vm1398, %v1397, %v1274
      %vm1407 = vcmask 850944
      %v1409 = vsel %vm1407, %v1400, %v1276
      %v1411 = vsel %vm1407, %v1402, %v1278
      %v1413 = vsel %vm1407, %v1404, %v1280
      %v1415 = vsel %vm1407, %v1406, %v1282
      %vm1416 = vcmask 916480
      %v1418 = vsel %vm1416, %v1409, %v1284
      %v1420 = vsel %vm1416, %v1411, %v1286
      %v1422 = vsel %vm1416, %v1413, %v1288
      %v1424 = vsel %vm1416, %v1415, %v1290
      %vm1425 = vcmask 982016
      %v1427 = vsel %vm1425, %v1418, %v1292
      %v1430 = vsel %vm1425, %v1420, %v1294
      %v1433 = vsel %vm1425, %v1422, %v1296
      %v1436 = vsel %vm1425, %v1424, %v1298
      %1438 = vrot.lane.b32.xlu0 %v1107, 8
      %v1439 = vpop.permute.xlu0 %1438
      %1440 = vrot.lane.b32.xlu0 %v1110, 8
      %v1441 = vpop.permute.xlu0 %1440
      %1442 = vrot.lane.b32.xlu0 %v1144, 8
      %v1443 = vpop.permute.xlu0 %1442
      %1444 = vrot.lane.b32.xlu0 %v1178, 8
      %v1445 = vpop.permute.xlu0 %1444
      %v1448 = vsel %vm1299, %v1087, %v1439
      %v1451 = vsel %vm1299, %v1090, %v1441
      %v1454 = vsel %vm1299, %v1139, %v1443
      %v1457 = vsel %vm1299, %v1173, %v1445
      %v1458 = vld [vmem:[%s6] sm:$0xf]
      %v1459 = vld [vmem:[%s6 + $0x4] sm:$0xf]
      %v1460 = vld [vmem:[%s6 + $0x8] sm:$0xf]
      %v1461 = vld [vmem:[%s6 + $0xc] sm:$0xf]
      %v1462 = vld [vmem:[%s6 + $0x10] sm:$0xf]
      %v1463 = vld [vmem:[%s6 + $0x14] sm:$0xf]
      %v1464 = vld [vmem:[%s6 + $0x18] sm:$0xf]
      %v1465 = vld [vmem:[%s6 + $0x1c] sm:$0xf]
      %v1466 = vld [vmem:[%s6 + $0x20] sm:$0xf]
      %v1467 = vld [vmem:[%s6 + $0x24] sm:$0xf]
      %v1468 = vld [vmem:[%s6 + $0x28] sm:$0xf]
      %v1469 = vld [vmem:[%s6 + $0x2c] sm:$0xf]
      %v1470 = vld [vmem:[%s6 + $0x30] sm:$0xf]
      %v1471 = vld [vmem:[%s6 + $0x34] sm:$0xf]
      %v1472 = vld [vmem:[%s6 + $0x38] sm:$0xf]
      %v1473 = vld [vmem:[%s6 + $0x3c] sm:$0xf]
      %v1474 = vld [vmem:[%s6 + $0x40] sm:$0xf]
      %v1475 = vld [vmem:[%s6 + $0x44] sm:$0xf]
      %v1476 = vld [vmem:[%s7] sm:$0x1]
      %v1478 = vperm.slane %v1476, 0
      %v1498 = vunpack.c.l.b16 %v1458
      %v1499 = vunpack.c.l.b16 %v1459
      %v1500 = vunpack.c.l.b16 %v1460
      %v1501 = vunpack.c.l.b16 %v1461
      %v1502 = vunpack.c.l.b16 %v1462
      %v1503 = vunpack.c.l.b16 %v1463
      %v1504 = vunpack.c.l.b16 %v1464
      %v1505 = vunpack.c.l.b16 %v1465
      %v1506 = vunpack.c.l.b16 %v1466
      %v1507 = vunpack.c.l.b16 %v1467
      %v1508 = vunpack.c.l.b16 %v1468
      %v1509 = vunpack.c.l.b16 %v1469
      %v1510 = vunpack.c.l.b16 %v1470
      %v1511 = vunpack.c.l.b16 %v1471
      %v1512 = vunpack.c.l.b16 %v1472
      %v1513 = vunpack.c.l.b16 %v1473
      %v1514 = vunpack.c.l.b16 %v1474
      %v1515 = vunpack.c.l.b16 %v1475
      %v1516 = vpack.c.b16 %v1499, %v1498
      %v1517 = vpack.c.b16 %v1501, %v1500
      %v1518 = vpack.c.b16 %v1503, %v1502
      %v1519 = vpack.c.b16 %v1505, %v1504
      %v1520 = vpack.c.b16 %v1507, %v1506
      %v1521 = vpack.c.b16 %v1509, %v1508
      %v1522 = vpack.c.b16 %v1511, %v1510
      %v1523 = vpack.c.b16 %v1513, %v1512
      %v1524 = vpack.c.b16 %v1515, %v1514
      %v1534 = vsel %vm1308, %v1448, 0
      %v1536 = vsel %vm1308, %v1451, 0
      %v1538 = vsel %vm1308, %v1454, 0
      %v1540 = vsel %vm1308, %v1457, 0
      %1542 = vmatpush.bf16.msra.mxu0 %v1523
      %1543 = vmatpush.bf16.msra.mxu0 %v1522
      %1544 = vmatpush.bf16.msra.mxu0 %v1521
      %1545 = vmatpush.bf16.msra.mxu0 %v1520
      %1546 = vmatpush.bf16.msra.mxu0 %v1519
      %1547 = vmatpush.bf16.msra.mxu0 %v1518
      %1548 = vmatpush.bf16.msra.mxu0 %v1517
      %1549 = vmatpush.bf16.msra.mxu0 %v1516
      %1550 = vmatmul.bf16.gmra.mxu0 %v1427
      %v1551 = vpop.f32.mrf.mxu0
      %v1552 = vadd.f32 %v1478, %v1551
      %v1553 = vpop.f32.mrf.mxu0
      %v1554 = vadd.f32 %v1478, %v1553
      %1555 = vmatmul.bf16.gmra.mxu0 %v1430
      %v1556 = vpop.f32.mrf.mxu0
      %v1557 = vadd.f32 %v1478, %v1556
      %v1558 = vpop.f32.mrf.mxu0
      %v1559 = vadd.f32 %v1478, %v1558
      %1560 = vmatmul.bf16.gmra.mxu0 %v1433
      %v1561 = vpop.f32.mrf.mxu0
      %v1562 = vadd.f32 %v1478, %v1561
      %v1563 = vpop.f32.mrf.mxu0
      %v1564 = vadd.f32 %v1478, %v1563
      %1565 = vmatmul.bf16.gmra.mxu0 %v1436
      %v1566 = vpop.f32.mrf.mxu0
      %v1567 = vadd.f32 %v1478, %v1566
      %v1568 = vpop.f32.mrf.mxu0
      %v1569 = vadd.f32 %v1478, %v1568
      %1570 = vdwg.mxu0
      %1571 = vmatpush.bf16.msra.mxu0 0
      %1572 = vmatpush.bf16.msra.mxu0 0
      %1573 = vmatpush.bf16.msra.mxu0 0
      %1574 = vmatpush.bf16.msra.mxu0 0
      %1575 = vmatpush.bf16.msra.mxu0 0
      %1576 = vmatpush.bf16.msra.mxu0 0
      %1577 = vmatpush.bf16.msra.mxu0 0
      %1578 = vmatpush.bf16.msra.mxu0 %v1524
      %1579 = vmatmul.bf16.gmra.mxu0 %v1534
      %v1580 = vpop.f32.mrf.mxu0
      %v1581 = vadd.f32 %v1552, %v1580
      %v1582 = vpop.f32.mrf.mxu0
      %v1583 = vadd.f32 %v1554, %v1582
      %1584 = vmatmul.bf16.gmra.mxu0 %v1536
      %v1585 = vpop.f32.mrf.mxu0
      %v1586 = vadd.f32 %v1557, %v1585
      %v1587 = vpop.f32.mrf.mxu0
      %v1588 = vadd.f32 %v1559, %v1587
      %1589 = vmatmul.bf16.gmra.mxu0 %v1538
      %v1590 = vpop.f32.mrf.mxu0
      %v1591 = vadd.f32 %v1562, %v1590
      %v1592 = vpop.f32.mrf.mxu0
      %v1593 = vadd.f32 %v1564, %v1592
      %1594 = vmatmul.bf16.gmra.mxu0 %v1540
      %v1595 = vpop.f32.mrf.mxu0
      %v1596 = vadd.f32 %v1567, %v1595
      %v1597 = vpop.f32.mrf.mxu0
      %v1598 = vadd.f32 %v1569, %v1597
      %1599 = vdwg.mxu0
      %vm1600 = vcmp.ge.f32.partialorder %v1581, 0.0
      %vm1601 = vcmp.ge.f32.partialorder %v1583, 0.0
      %vm1602 = vcmp.ge.f32.partialorder %v1586, 0.0
      %vm1603 = vcmp.ge.f32.partialorder %v1588, 0.0
      %vm1604 = vcmp.ge.f32.partialorder %v1591, 0.0
      %vm1605 = vcmp.ge.f32.partialorder %v1593, 0.0
      %vm1606 = vcmp.ge.f32.partialorder %v1596, 0.0
      %vm1607 = vcmp.ge.f32.partialorder %v1598, 0.0
      %v1608 = vmul.f32 %v1581, 0.01
      %v1609 = vmul.f32 %v1583, 0.01
      %v1610 = vmul.f32 %v1586, 0.01
      %v1611 = vmul.f32 %v1588, 0.01
      %v1612 = vmul.f32 %v1591, 0.01
      %v1613 = vmul.f32 %v1593, 0.01
      %v1614 = vmul.f32 %v1596, 0.01
      %v1615 = vmul.f32 %v1598, 0.01
      %v1616 = vsel %vm1600, %v1581, %v1608
      %v1617 = vsel %vm1601, %v1583, %v1609
      %v1618 = vsel %vm1602, %v1586, %v1610
      %v1619 = vsel %vm1603, %v1588, %v1611
      %v1620 = vsel %vm1604, %v1591, %v1612
      %v1621 = vsel %vm1605, %v1593, %v1613
      %v1622 = vsel %vm1606, %v1596, %v1614
      %v1623 = vsel %vm1607, %v1598, %v1615
      %v1624 = vmul.f32 %v1616, 0.5
      %v1625 = vmul.f32 %v1617, 0.5
      %v1626 = vmul.f32 %v1618, 0.5
      %v1627 = vmul.f32 %v1619, 0.5
      %v1628 = vmul.f32 %v1620, 0.5
      %v1629 = vmul.f32 %v1621, 0.5
      %v1630 = vmul.f32 %v1622, 0.5
      %v1631 = vmul.f32 %v1623, 0.5
      %v1632 = vld [vmem:[%s685] sm:$0xf]
      %v1633 = vld [vmem:[%s685 + $0x4] sm:$0xf]
      %v1634 = vld [vmem:[%s685 + $0x8] sm:$0xf]
      %v1635 = vld [vmem:[%s685 + $0xc] sm:$0xf]
      %v1636 = vld [vmem:[%s685 + $0x10] sm:$0xf]
      %v1637 = vld [vmem:[%s685 + $0x14] sm:$0xf]
      %v1638 = vld [vmem:[%s685 + $0x18] sm:$0xf]
      %v1639 = vld [vmem:[%s685 + $0x1c] sm:$0xf]
      %v1640 = vunpack.c.l.bf16 %v1632
      %v1641 = vunpack.c.l.bf16 %v1633
      %v1642 = vunpack.c.l.bf16 %v1634
      %v1643 = vunpack.c.l.bf16 %v1635
      %v1644 = vunpack.c.l.bf16 %v1636
      %v1645 = vunpack.c.l.bf16 %v1637
      %v1646 = vunpack.c.l.bf16 %v1638
      %v1647 = vunpack.c.l.bf16 %v1639
      %v1648 = vmul.f32 %v1640, 0.3
      %v1649 = vmul.f32 %v1641, 0.3
      %v1650 = vmul.f32 %v1642, 0.3
      %v1651 = vmul.f32 %v1643, 0.3
      %v1652 = vmul.f32 %v1644, 0.3
      %v1653 = vmul.f32 %v1645, 0.3
      %v1654 = vmul.f32 %v1646, 0.3
      %v1655 = vmul.f32 %v1647, 0.3
      %v1656 = vadd.f32 %v1624, %v1648
      %v1657 = vadd.f32 %v1625, %v1649
      %v1658 = vadd.f32 %v1626, %v1650
      %v1659 = vadd.f32 %v1627, %v1651
      %v1660 = vadd.f32 %v1628, %v1652
      %v1661 = vadd.f32 %v1629, %v1653
      %v1662 = vadd.f32 %v1630, %v1654
      %v1663 = vadd.f32 %v1631, %v1655
      %v1664 = vpack.c.bf16 %v1656, %v1656
      %v1665 = vpack.c.bf16 %v1657, %v1657
      %v1666 = vpack.c.bf16 %v1658, %v1658
      %v1667 = vpack.c.bf16 %v1659, %v1659
      %v1668 = vpack.c.bf16 %v1660, %v1660
      %v1669 = vpack.c.bf16 %v1661, %v1661
      %v1670 = vpack.c.bf16 %v1662, %v1662
      %v1671 = vpack.c.bf16 %v1663, %v1663
      %vm1672 = vcmask 60416
      %1673 = vst.msk [vmem:[%s694] sm:$0xf] %vm1672, %v1664
      %1674 = vst.msk [vmem:[%s694 + $0x4] sm:$0xf] %vm1672, %v1665
      %1675 = vst.msk [vmem:[%s694 + $0x8] sm:$0xf] %vm1672, %v1666
      %1676 = vst.msk [vmem:[%s694 + $0xc] sm:$0xf] %vm1672, %v1667
      %1677 = vst.msk [vmem:[%s694 + $0x10] sm:$0xf] %vm1672, %v1668
      %1678 = vst.msk [vmem:[%s694 + $0x14] sm:$0xf] %vm1672, %v1669
      %1679 = vst.msk [vmem:[%s694 + $0x18] sm:$0xf] %vm1672, %v1670
      %1680 = vst.msk [vmem:[%s694 + $0x1c] sm:$0xf] %vm1672, %v1671
      %p1681 = scmp.lt.s32.totalorder %s24, 1
      %s1682 = scalar_select %p1681, %s24, 1
      %p1683 = scmp.lt.s32.totalorder %s25, 3
      %s1684 = scalar_select %p1683, %s25, 3
      %s1685 = smul.addr %s1684, 8
      %s1686 = smul.addr %s1682, 32
      %s1687 = sadd.s32 %s1685, %s1686
      %s1688 = smul.addr %s1687, 4
      %s1689 = scalar_lea.vmem %s9, %s1688
      // Predicated region
      $region57: #{_lambda_.1} parent=55 // pred_check
        %p1690 = pneg %p322
      $region58: #{_lambda_.1} parent=55 // pred_check_branch
        %1692 = sbr.rel (%p1690) target = $region60
      $region59: #{_lambda_.1} parent=55 // pred_region
        _
      $region60: #{_lambda_.1} parent=55 // pred_fallthru
        _
    $region56: #{_lambda_.1} parent=5 // pred_fallthru
      _
    %p1693 = scmp.le.s32.totalorder 2, %s15
    // Predicated region
    $region61: #{_lambda_.1} parent=5 // pred_check
      %p1694 = pneg %p1693
    $region62: #{_lambda_.1} parent=5 // pred_check_branch
      %1696 = sbr.rel (%p1694) target = $region64
    $region63: #{_lambda_.1} parent=5 // pred_region
      %s1697 = ssub.s32 %s15, 2
      // Predicated region
      $region65: #{_lambda_.1} parent=63 // pred_check
        %p1698 = pneg %p328
      $region66: #{_lambda_.1} parent=63 // pred_check_branch
        %1700 = sbr.rel (%p1698) target = $region68
      $region67: #{_lambda_.1} parent=63 // pred_region
        %p1701 = scmp.lt.s32.totalorder %s26, 1
        %s1702 = scalar_select %p1701, %s26, 1
        %p1703 = scmp.lt.s32.totalorder %s27, 3
        %s1704 = scalar_select %p1703, %s27, 3
        %s1705 = smul.addr %s1704, 8
        %s1706 = smul.addr %s1702, 32
        %s1707 = sadd.s32 %s1705, %s1706
        %s1708 = smul.addr %s1707, 4
        %s1709 = scalar_lea.vmem %s9, %s1708
      $region68: #{_lambda_.1} parent=63 // pred_fallthru
        _
    $region64: #{_lambda_.1} parent=5 // pred_fallthru
      _
  $region6: #{_lambda_.1} parent=0 // loop_footer
    %s19 = sadd.s32 1, %s15
  $region7: #{_lambda_.1} parent=0 // loop_footer_branch
    %14 = sbr.rel target = $region3
  $region8: #{_lambda_.1} parent=0 // loop_exit
    _

</llo_original>
